<compile_context>
chip_gen: v6e
topology: v6e:2x2x1
jax: 0.10.0
libtpu: 0.0.40
codegen_flags: <defaults>
</compile_context>

<pallas_src>
import functools

import jax
import jax.numpy as jnp
import numpy as np
from jax.experimental import pallas as pl
from jax.experimental.pallas import tpu as pltpu

_LANE = 128


def _round_up(v, m):
    return (v + m - 1) // m * m


def _pad_channels(x, c_to):
    pad = c_to - x.shape[-1]
    if pad == 0:
        return x
    return jnp.pad(x, ((0, 0),) * (x.ndim - 1) + ((0, pad),))


# ------------------------------ Pallas kernel -------------------------------

def _fused_conv_kernel(x_ref, w_ref, shift_ref, *rest, stride, Ho, Wo, cin_p,
                       relu, shortcut):
    """3x3 conv + BN shift [+ fused shortcut] [+ ReLU] for one (image, cout tile).

    x_ref:     (1, Hph, Wph, stride^2 * cin_p) bf16 phase-decomposed padded
               input. Tap (kh, kw) lives in channel block (kh%s)*s + (kw%s) at
               spatial offset (kh//s, kw//s) -- all unit-stride windows.
    w_ref:     (9, cin_p, tn) bf16, BN scale already folded into the columns.
    shift_ref: (1, tn) f32 BN shift.
    rest:      shortcut == "proj":     xs (1, M, cin_sc), wsc (cin_sc, tn),
                                       bsc (1, tn), then o_ref
               shortcut == "identity": res (1, M, tn) f32, then o_ref
               shortcut is None:       o_ref only
    """
    o_ref = rest[-1]
    tn = w_ref.shape[-1]
    M = Ho * Wo

    acc = jnp.zeros((M, tn), jnp.float32)
    # Fused im2col: 9 shifted unit-stride windows, each a bf16 MXU matmul with
    # f32 accumulation.  The whole K reduction stays inside this invocation.
    for kh in range(3):
        for kw in range(3):
            t = kh * 3 + kw
            p = (kh % stride) * stride + (kw % stride)
            dh, dw = kh // stride, kw // stride
            slab = x_ref[0, pl.ds(dh, Ho), pl.ds(dw, Wo),
                         pl.ds(p * cin_p, cin_p)]
            acc = acc + jnp.dot(slab.reshape(M, cin_p), w_ref[t],
                                preferred_element_type=jnp.float32)

    out = acc + shift_ref[...]                      # BN shift (scale folded)

    if shortcut == "proj":                          # fused 1x1 conv + BN
        xs_ref, wsc_ref, bsc_ref = rest[0], rest[1], rest[2]
        out = out + jnp.dot(xs_ref[0], wsc_ref[...],
                            preferred_element_type=jnp.float32) + bsc_ref[...]
    elif shortcut == "identity":                    # fused identity residual
        out = out + rest[0][0].astype(jnp.float32)

    if relu:
        out = jnp.maximum(out, 0.0)
    o_ref[...] = out[None].astype(o_ref.dtype)      # lane-dense (tn=128) store


# ------------------------------ call wrapper --------------------------------

def _fused_conv(xph, w, shift, *, Ho, Wo, stride, relu, out_dtype,
                shortcut=None, shortcut_args=()):
    n = xph.shape[0]
    hph, wph, ctot = xph.shape[1], xph.shape[2], xph.shape[3]
    cin_p = ctot // (stride * stride)
    cout_p = w.shape[-1]
    M = Ho * Wo
    tn = min(_LANE, cout_p)            # lane-dense cout tiles (128 on all gens)
    n_cb = cout_p // tn

    inputs = [xph, w, shift]
    in_specs = [
        pl.BlockSpec((1, hph, wph, ctot), lambda i, j: (i, 0, 0, 0)),
        pl.BlockSpec((9, cin_p, tn), lambda i, j: (0, 0, j)),
        pl.BlockSpec((1, tn), lambda i, j: (0, j)),
    ]
    if shortcut == "proj":
        xs, wsc, bsc = shortcut_args
        inputs += [xs, wsc, bsc]
        in_specs += [
            pl.BlockSpec((1, M, xs.shape[-1]), lambda i, j: (i, 0, 0)),
            pl.BlockSpec((wsc.shape[0], tn), lambda i, j: (0, j)),
            pl.BlockSpec((1, tn), lambda i, j: (0, j)),
        ]
    elif shortcut == "identity":
        (res,) = shortcut_args
        inputs.append(res)
        in_specs.append(pl.BlockSpec((1, M, tn), lambda i, j: (i, 0, j)))

    kernel = functools.partial(
        _fused_conv_kernel, stride=stride, Ho=Ho, Wo=Wo, cin_p=cin_p,
        relu=relu, shortcut=shortcut)

    return pl.pallas_call(
        kernel,
        grid=(n, n_cb),
        out_shape=jax.ShapeDtypeStruct((n, M, cout_p), out_dtype),
        in_specs=in_specs,
        out_specs=pl.BlockSpec((1, M, tn), lambda i, j: (i, 0, j)),
        compiler_params=pltpu.CompilerParams(
            # Both grid axes are independent -> megacore / dual-TC sharding.
            dimension_semantics=("parallel", "parallel"),
            # Per-step working set ~1 MiB; 32 MiB is safe on v5e/v6e/v7x.
            vmem_limit_bytes=32 * 1024 * 1024),
    )(*inputs)


# ------------------------------- glue (JAX) ---------------------------------

def _phase_split(x, stride, Ho, Wo):
    """Pad H/W by 1 and split into stride^2 phases, stacked on channels.

    Output (N, Hph, Wph, stride^2*C). Tap (kh, kw) of the 3x3/stride-s conv is
    the unit-stride window [kh//s : kh//s+Ho, kw//s : kw//s+Wo] of channel
    block (kh%s)*s + (kw%s).  Total volume equals the input (no 9x blow-up).
    """
    s = stride
    xp = jnp.pad(x, ((0, 0), (1, 1), (1, 1), (0, 0)))
    hph = Ho + 2 // s
    wph = Wo + 2 // s
    ph = max(0, s * hph - xp.shape[1])
    pw = max(0, s * wph - xp.shape[2])
    xp = jnp.pad(xp, ((0, 0), (0, ph), (0, pw), (0, 0)))
    phases = [xp[:, a::s, b::s, :][:, :hph, :wph, :]
              for a in range(s) for b in range(s)]
    return jnp.concatenate(phases, axis=-1)


def _fold_bn_into_weights(w_hwio, scale, shift, cin_p, cout_p):
    """HWIO conv weight -> (kh*kw, cin_p, cout_p) bf16 with BN scale folded in.

    Returns (weights_bf16, shift_f32[1, cout_p]); padded lanes are zero.
    """
    khw = w_hwio.shape[0] * w_hwio.shape[1]
    cin, cout = w_hwio.shape[2], w_hwio.shape[3]
    wf = jnp.zeros((khw, cin_p, cout_p), jnp.float32)
    wf = wf.at[:, :cin, :cout].set(
        w_hwio.reshape(khw, cin, cout) * scale[None, None, :])
    sh = jnp.zeros((1, cout_p), jnp.float32).at[0, :cout].set(shift)
    return wf.astype(jnp.bfloat16), sh


def init_basic_block(key, in_planes, planes, stride):
    """Deterministic synthetic parameters matching the PyTorch module shapes."""
    eps = 1e-5
    ks = jax.random.split(key, 6)

    def bn_params(k):
        k1, k2, k3, k4 = jax.random.split(k, 4)
        gamma = jax.random.uniform(k1, (planes,), jnp.float32, 0.5, 1.5)
        beta = 0.1 * jax.random.normal(k2, (planes,), jnp.float32)
        mean = 0.1 * jax.random.normal(k3, (planes,), jnp.float32)
        var = jax.random.uniform(k4, (planes,), jnp.float32, 0.5, 1.5)
        scale = gamma / jnp.sqrt(var + eps)
        shift = beta - mean * scale
        return scale, shift

    w1 = 0.1 * jax.random.normal(ks[0], (3, 3, in_planes, planes), jnp.float32)
    w2 = 0.1 * jax.random.normal(ks[1], (3, 3, planes, planes), jnp.float32)
    s1, b1 = bn_params(ks[2])
    s2, b2 = bn_params(ks[3])
    params = dict(w1=w1, w2=w2, s1=s1, b1=b1, s2=s2, b2=b2, stride=stride)
    if stride != 1 or in_planes != planes:
        wsc = 0.1 * jax.random.normal(ks[4], (1, 1, in_planes, planes),
                                      jnp.float32)
        ssc, bsc = bn_params(ks[5])
        params.update(wsc=wsc, ssc=ssc, bsc=bsc)
    return params


def basic_block_forward(params, x_nchw):
    x = jnp.transpose(x_nchw, (0, 2, 3, 1)).astype(jnp.float32)  # NCHW -> NHWC
    n, h, w_dim, cin = x.shape
    stride = params["stride"]
    planes = params["w1"].shape[-1]
    cin_p = _round_up(cin, _LANE)
    cout_p = _round_up(planes, _LANE)

    ho = (h - 1) // stride + 1
    wo = (w_dim - 1) // stride + 1
    m = ho * wo

    x_pad_c = _pad_channels(x, cin_p)          # f32, zero-filled padded lanes
    x_bf = x_pad_c.astype(jnp.bfloat16)

    # ---- conv1 + bn1 + relu (one fused kernel) ----
    w1, b1 = _fold_bn_into_weights(params["w1"], params["s1"], params["b1"],
                                   cin_p, cout_p)
    ph1 = _phase_split(x_bf, stride, ho, wo)
    out1 = _fused_conv(ph1, w1, b1, Ho=ho, Wo=wo, stride=stride, relu=True,
                       out_dtype=jnp.bfloat16)          # (n, m, cout_p) bf16

    # ---- conv2 + bn2 + shortcut + relu (one fused kernel) ----
    w2, b2 = _fold_bn_into_weights(params["w2"], params["s2"], params["b2"],
                                   cout_p, cout_p)
    ph2 = _phase_split(out1.reshape(n, ho, wo, cout_p), 1, ho, wo)
    if "wsc" in params:
        wsc, bsc = _fold_bn_into_weights(params["wsc"], params["ssc"],
                                         params["bsc"], cin_p, cout_p)
        xs = x_bf[:, ::stride, ::stride, :].reshape(n, m, cin_p)
        out = _fused_conv(ph2, w2, b2, Ho=ho, Wo=wo, stride=1, relu=True,
                          out_dtype=jnp.float32, shortcut="proj",
                          shortcut_args=(xs, wsc[0], bsc))
    else:
        res = x_pad_c.reshape(n, m, cout_p)             # identity, f32 exact
        out = _fused_conv(ph2, w2, b2, Ho=ho, Wo=wo, stride=1, relu=True,
                          out_dtype=jnp.float32, shortcut="identity",
                          shortcut_args=(res,))

    out = out[:, :, :planes].reshape(n, ho, wo, planes)
    return jnp.transpose(out, (0, 3, 1, 2))             # NHWC -> NCHW


def ref_forward(params, x_nchw, *, match_kernel_dtypes=False):
    """Pure-JAX reference (lax conv).  With match_kernel_dtypes=True it uses
    the same bf16 inputs / folded-scale bf16 weights / f32 accumulation as the
    Pallas kernels, giving a tight comparison."""
    x = jnp.transpose(x_nchw, (0, 2, 3, 1)).astype(jnp.float32)
    s = params["stride"]

    def conv(a, w, scale, shift, stride, pad):
        if match_kernel_dtypes:
            a = a.astype(jnp.bfloat16)
            w = (w * scale).astype(jnp.bfloat16)
            post_scale = 1.0
        else:
            post_scale = scale
        o = jax.lax.conv_general_dilated(
            a, w, (stride, stride), ((pad, pad), (pad, pad)),
            dimension_numbers=("NHWC", "HWIO", "NHWC"),
            preferred_element_type=jnp.float32)
        return o * post_scale + shift

    o1 = jnp.maximum(conv(x, params["w1"], params["s1"], params["b1"], s, 1),
                     0.0)
    if match_kernel_dtypes:
        o1 = o1.astype(jnp.bfloat16)       # kernel writes out1 as bf16
    o2 = conv(o1, params["w2"], params["s2"], params["b2"], 1, 1)
    if "wsc" in params:
        sc = conv(x, params["wsc"], params["ssc"], params["bsc"], s, 0)
    else:
        sc = x
    out = jnp.maximum(o2 + sc, 0.0)
    return jnp.transpose(out, (0, 3, 1, 2))


if __name__ == "__main__":
    key = jax.random.PRNGKey(0)
    n, h, w = 2, 16, 16
    configs = [
        dict(in_planes=4, planes=8, stride=2),   # projection shortcut path
        dict(in_planes=8, planes=8, stride=1),   # identity shortcut path
    ]
    for cfg in configs:
        key, kx, kp = jax.random.split(key, 3)
        x = jax.random.normal(kx, (n, cfg["in_planes"], h, w), jnp.float32)
        params = init_basic_block(kp, cfg["in_planes"], cfg["planes"],
                                  cfg["stride"])

        out = jax.block_until_ready(basic_block_forward(params, x))
        ho = (h - 1) // cfg["stride"] + 1
        assert out.shape == (n, cfg["planes"], ho, ho)

        # Tight check vs. a reference that mirrors the kernel's bf16/f32 math.
        ref_bf = ref_forward(params, x, match_kernel_dtypes=True)
        np.testing.assert_allclose(np.asarray(out), np.asarray(ref_bf),
                                   rtol=1e-2, atol=1e-2)
        # Loose check vs. the pure-f32 reference (bf16 MXU rounding only).
        ref32 = ref_forward(params, x, match_kernel_dtypes=False)
        np.testing.assert_allclose(np.asarray(out), np.asarray(ref32),
                                   rtol=7e-2, atol=7e-2)

    print("KERNEL_OK")
</pallas_src>

<mosaic_0001>
module attributes {stable_mosaic.version = 11 : i64} {
  func.func @_fused_conv_kernel(%arg0: i32, %arg1: i32, %arg2: memref<1x9x9x512xbf16, #tpu.memory_space<vmem>>, %arg3: memref<9x128x128xbf16, #tpu.memory_space<vmem>>, %arg4: memref<1x128xf32, #tpu.memory_space<vmem>>, %arg5: memref<1x64x128xbf16, #tpu.memory_space<vmem>>) attributes {dimension_semantics = [#tpu.dimension_semantics<parallel>, #tpu.dimension_semantics<parallel>], iteration_bounds = array<i64: 2, 1>, scalar_prefetch = 0 : i64, scratch_operands = 0 : i64, tpu.core_type = #tpu.core_type<tc>, window_params = [{transform_indices = @transform_0, window_bounds = array<i64: 1, 9, 9, 512>}, {transform_indices = @transform_1, window_bounds = array<i64: 9, 128, 128>}, {transform_indices = @transform_2, window_bounds = array<i64: 1, 128>}, {transform_indices = @transform_3, window_bounds = array<i64: 1, 64, 128>}]} {
    %cst = arith.constant 0.000000e+00 : f32
    %0 = vector.broadcast %cst : f32 to vector<64x128xf32>
    %c0 = arith.constant 0 : index
    %c0_0 = arith.constant 0 : index
    %c0_1 = arith.constant 0 : index
    %c0_2 = arith.constant 0 : index
    %1 = vector.load %arg2[%c0, %c0_0, %c0_1, %c0_2] : memref<1x9x9x512xbf16, #tpu.memory_space<vmem>>, vector<1x8x8x128xbf16>
    %2 = vector.shape_cast %1 : vector<1x8x8x128xbf16> to vector<8x8x128xbf16>
    %3 = vector.shape_cast %2 : vector<8x8x128xbf16> to vector<64x128xbf16>
    %c0_3 = arith.constant 0 : index
    %c0_4 = arith.constant 0 : index
    %c0_5 = arith.constant 0 : index
    %4 = vector.load %arg3[%c0_3, %c0_4, %c0_5] : memref<9x128x128xbf16, #tpu.memory_space<vmem>>, vector<1x128x128xbf16>
    %5 = vector.shape_cast %4 : vector<1x128x128xbf16> to vector<128x128xbf16>
    %cst_6 = arith.constant dense<0.000000e+00> : vector<64x128xf32>
    %6 = tpu.matmul %3, %5, %cst_6 {dimension_numbers = #tpu.dot_dimension_numbers<[1], [0], [0], [1], [0, 0, 1, 1], [], []>} : vector<64x128xbf16>, vector<128x128xbf16>, vector<64x128xf32> -> vector<64x128xf32>
    %7 = arith.addf %0, %6 : vector<64x128xf32>
    %c0_7 = arith.constant 0 : index
    %c0_8 = arith.constant 0 : index
    %c0_9 = arith.constant 0 : index
    %c128 = arith.constant 128 : index
    %8 = vector.load %arg2[%c0_7, %c0_8, %c0_9, %c128] : memref<1x9x9x512xbf16, #tpu.memory_space<vmem>>, vector<1x8x8x128xbf16>
    %9 = vector.shape_cast %8 : vector<1x8x8x128xbf16> to vector<8x8x128xbf16>
    %10 = vector.shape_cast %9 : vector<8x8x128xbf16> to vector<64x128xbf16>
    %c1 = arith.constant 1 : index
    %c0_10 = arith.constant 0 : index
    %c0_11 = arith.constant 0 : index
    %11 = vector.load %arg3[%c1, %c0_10, %c0_11] : memref<9x128x128xbf16, #tpu.memory_space<vmem>>, vector<1x128x128xbf16>
    %12 = vector.shape_cast %11 : vector<1x128x128xbf16> to vector<128x128xbf16>
    %cst_12 = arith.constant dense<0.000000e+00> : vector<64x128xf32>
    %13 = tpu.matmul %10, %12, %cst_12 {dimension_numbers = #tpu.dot_dimension_numbers<[1], [0], [0], [1], [0, 0, 1, 1], [], []>} : vector<64x128xbf16>, vector<128x128xbf16>, vector<64x128xf32> -> vector<64x128xf32>
    %14 = arith.addf %7, %13 : vector<64x128xf32>
    %c0_13 = arith.constant 0 : index
    %c0_14 = arith.constant 0 : index
    %c1_15 = arith.constant 1 : index
    %c0_16 = arith.constant 0 : index
    %15 = vector.load %arg2[%c0_13, %c0_14, %c1_15, %c0_16] : memref<1x9x9x512xbf16, #tpu.memory_space<vmem>>, vector<1x8x8x128xbf16>
    %16 = vector.shape_cast %15 : vector<1x8x8x128xbf16> to vector<8x8x128xbf16>
    %17 = vector.shape_cast %16 : vector<8x8x128xbf16> to vector<64x128xbf16>
    %c2 = arith.constant 2 : index
    %c0_17 = arith.constant 0 : index
    %c0_18 = arith.constant 0 : index
    %18 = vector.load %arg3[%c2, %c0_17, %c0_18] : memref<9x128x128xbf16, #tpu.memory_space<vmem>>, vector<1x128x128xbf16>
    %19 = vector.shape_cast %18 : vector<1x128x128xbf16> to vector<128x128xbf16>
    %cst_19 = arith.constant dense<0.000000e+00> : vector<64x128xf32>
    %20 = tpu.matmul %17, %19, %cst_19 {dimension_numbers = #tpu.dot_dimension_numbers<[1], [0], [0], [1], [0, 0, 1, 1], [], []>} : vector<64x128xbf16>, vector<128x128xbf16>, vector<64x128xf32> -> vector<64x128xf32>
    %21 = arith.addf %14, %20 : vector<64x128xf32>
    %c0_20 = arith.constant 0 : index
    %c0_21 = arith.constant 0 : index
    %c0_22 = arith.constant 0 : index
    %c256 = arith.constant 256 : index
    %22 = vector.load %arg2[%c0_20, %c0_21, %c0_22, %c256] : memref<1x9x9x512xbf16, #tpu.memory_space<vmem>>, vector<1x8x8x128xbf16>
    %23 = vector.shape_cast %22 : vector<1x8x8x128xbf16> to vector<8x8x128xbf16>
    %24 = vector.shape_cast %23 : vector<8x8x128xbf16> to vector<64x128xbf16>
    %c3 = arith.constant 3 : index
    %c0_23 = arith.constant 0 : index
    %c0_24 = arith.constant 0 : index
    %25 = vector.load %arg3[%c3, %c0_23, %c0_24] : memref<9x128x128xbf16, #tpu.memory_space<vmem>>, vector<1x128x128xbf16>
    %26 = vector.shape_cast %25 : vector<1x128x128xbf16> to vector<128x128xbf16>
    %cst_25 = arith.constant dense<0.000000e+00> : vector<64x128xf32>
    %27 = tpu.matmul %24, %26, %cst_25 {dimension_numbers = #tpu.dot_dimension_numbers<[1], [0], [0], [1], [0, 0, 1, 1], [], []>} : vector<64x128xbf16>, vector<128x128xbf16>, vector<64x128xf32> -> vector<64x128xf32>
    %28 = arith.addf %21, %27 : vector<64x128xf32>
    %c0_26 = arith.constant 0 : index
    %c0_27 = arith.constant 0 : index
    %c0_28 = arith.constant 0 : index
    %c384 = arith.constant 384 : index
    %29 = vector.load %arg2[%c0_26, %c0_27, %c0_28, %c384] : memref<1x9x9x512xbf16, #tpu.memory_space<vmem>>, vector<1x8x8x128xbf16>
    %30 = vector.shape_cast %29 : vector<1x8x8x128xbf16> to vector<8x8x128xbf16>
    %31 = vector.shape_cast %30 : vector<8x8x128xbf16> to vector<64x128xbf16>
    %c4 = arith.constant 4 : index
    %c0_29 = arith.constant 0 : index
    %c0_30 = arith.constant 0 : index
    %32 = vector.load %arg3[%c4, %c0_29, %c0_30] : memref<9x128x128xbf16, #tpu.memory_space<vmem>>, vector<1x128x128xbf16>
    %33 = vector.shape_cast %32 : vector<1x128x128xbf16> to vector<128x128xbf16>
    %cst_31 = arith.constant dense<0.000000e+00> : vector<64x128xf32>
    %34 = tpu.matmul %31, %33, %cst_31 {dimension_numbers = #tpu.dot_dimension_numbers<[1], [0], [0], [1], [0, 0, 1, 1], [], []>} : vector<64x128xbf16>, vector<128x128xbf16>, vector<64x128xf32> -> vector<64x128xf32>
    %35 = arith.addf %28, %34 : vector<64x128xf32>
    %c0_32 = arith.constant 0 : index
    %c0_33 = arith.constant 0 : index
    %c1_34 = arith.constant 1 : index
    %c256_35 = arith.constant 256 : index
    %36 = vector.load %arg2[%c0_32, %c0_33, %c1_34, %c256_35] : memref<1x9x9x512xbf16, #tpu.memory_space<vmem>>, vector<1x8x8x128xbf16>
    %37 = vector.shape_cast %36 : vector<1x8x8x128xbf16> to vector<8x8x128xbf16>
    %38 = vector.shape_cast %37 : vector<8x8x128xbf16> to vector<64x128xbf16>
    %c5 = arith.constant 5 : index
    %c0_36 = arith.constant 0 : index
    %c0_37 = arith.constant 0 : index
    %39 = vector.load %arg3[%c5, %c0_36, %c0_37] : memref<9x128x128xbf16, #tpu.memory_space<vmem>>, vector<1x128x128xbf16>
    %40 = vector.shape_cast %39 : vector<1x128x128xbf16> to vector<128x128xbf16>
    %cst_38 = arith.constant dense<0.000000e+00> : vector<64x128xf32>
    %41 = tpu.matmul %38, %40, %cst_38 {dimension_numbers = #tpu.dot_dimension_numbers<[1], [0], [0], [1], [0, 0, 1, 1], [], []>} : vector<64x128xbf16>, vector<128x128xbf16>, vector<64x128xf32> -> vector<64x128xf32>
    %42 = arith.addf %35, %41 : vector<64x128xf32>
    %c0_39 = arith.constant 0 : index
    %c1_40 = arith.constant 1 : index
    %c0_41 = arith.constant 0 : index
    %c0_42 = arith.constant 0 : index
    %43 = vector.load %arg2[%c0_39, %c1_40, %c0_41, %c0_42] : memref<1x9x9x512xbf16, #tpu.memory_space<vmem>>, vector<1x8x8x128xbf16>
    %44 = vector.shape_cast %43 : vector<1x8x8x128xbf16> to vector<8x8x128xbf16>
    %45 = vector.shape_cast %44 : vector<8x8x128xbf16> to vector<64x128xbf16>
    %c6 = arith.constant 6 : index
    %c0_43 = arith.constant 0 : index
    %c0_44 = arith.constant 0 : index
    %46 = vector.load %arg3[%c6, %c0_43, %c0_44] : memref<9x128x128xbf16, #tpu.memory_space<vmem>>, vector<1x128x128xbf16>
    %47 = vector.shape_cast %46 : vector<1x128x128xbf16> to vector<128x128xbf16>
    %cst_45 = arith.constant dense<0.000000e+00> : vector<64x128xf32>
    %48 = tpu.matmul %45, %47, %cst_45 {dimension_numbers = #tpu.dot_dimension_numbers<[1], [0], [0], [1], [0, 0, 1, 1], [], []>} : vector<64x128xbf16>, vector<128x128xbf16>, vector<64x128xf32> -> vector<64x128xf32>
    %49 = arith.addf %42, %48 : vector<64x128xf32>
    %c0_46 = arith.constant 0 : index
    %c1_47 = arith.constant 1 : index
    %c0_48 = arith.constant 0 : index
    %c128_49 = arith.constant 128 : index
    %50 = vector.load %arg2[%c0_46, %c1_47, %c0_48, %c128_49] : memref<1x9x9x512xbf16, #tpu.memory_space<vmem>>, vector<1x8x8x128xbf16>
    %51 = vector.shape_cast %50 : vector<1x8x8x128xbf16> to vector<8x8x128xbf16>
    %52 = vector.shape_cast %51 : vector<8x8x128xbf16> to vector<64x128xbf16>
    %c7 = arith.constant 7 : index
    %c0_50 = arith.constant 0 : index
    %c0_51 = arith.constant 0 : index
    %53 = vector.load %arg3[%c7, %c0_50, %c0_51] : memref<9x128x128xbf16, #tpu.memory_space<vmem>>, vector<1x128x128xbf16>
    %54 = vector.shape_cast %53 : vector<1x128x128xbf16> to vector<128x128xbf16>
    %cst_52 = arith.constant dense<0.000000e+00> : vector<64x128xf32>
    %55 = tpu.matmul %52, %54, %cst_52 {dimension_numbers = #tpu.dot_dimension_numbers<[1], [0], [0], [1], [0, 0, 1, 1], [], []>} : vector<64x128xbf16>, vector<128x128xbf16>, vector<64x128xf32> -> vector<64x128xf32>
    %56 = arith.addf %49, %55 : vector<64x128xf32>
    %c0_53 = arith.constant 0 : index
    %c1_54 = arith.constant 1 : index
    %c1_55 = arith.constant 1 : index
    %c0_56 = arith.constant 0 : index
    %57 = vector.load %arg2[%c0_53, %c1_54, %c1_55, %c0_56] : memref<1x9x9x512xbf16, #tpu.memory_space<vmem>>, vector<1x8x8x128xbf16>
    %58 = vector.shape_cast %57 : vector<1x8x8x128xbf16> to vector<8x8x128xbf16>
    %59 = vector.shape_cast %58 : vector<8x8x128xbf16> to vector<64x128xbf16>
    %c8 = arith.constant 8 : index
    %c0_57 = arith.constant 0 : index
    %c0_58 = arith.constant 0 : index
    %60 = vector.load %arg3[%c8, %c0_57, %c0_58] : memref<9x128x128xbf16, #tpu.memory_space<vmem>>, vector<1x128x128xbf16>
    %61 = vector.shape_cast %60 : vector<1x128x128xbf16> to vector<128x128xbf16>
    %cst_59 = arith.constant dense<0.000000e+00> : vector<64x128xf32>
    %62 = tpu.matmul %59, %61, %cst_59 {dimension_numbers = #tpu.dot_dimension_numbers<[1], [0], [0], [1], [0, 0, 1, 1], [], []>} : vector<64x128xbf16>, vector<128x128xbf16>, vector<64x128xf32> -> vector<64x128xf32>
    %63 = arith.addf %56, %62 : vector<64x128xf32>
    %c0_60 = arith.constant 0 : index
    %c0_61 = arith.constant 0 : index
    %64 = vector.load %arg4[%c0_60, %c0_61] : memref<1x128xf32, #tpu.memory_space<vmem>>, vector<1x128xf32>
    %65 = vector.broadcast %64 : vector<1x128xf32> to vector<64x128xf32>
    %66 = arith.addf %63, %65 : vector<64x128xf32>
    %cst_62 = arith.constant 0.000000e+00 : f32
    %67 = vector.broadcast %cst_62 : f32 to vector<64x128xf32>
    %68 = arith.maximumf %66, %67 : vector<64x128xf32>
    %69 = vector.shape_cast %68 : vector<64x128xf32> to vector<1x64x128xf32>
    %70 = arith.truncf %69 : vector<1x64x128xf32> to vector<1x64x128xbf16>
    %c0_63 = arith.constant 0 : index
    %c0_64 = arith.constant 0 : index
    %c0_65 = arith.constant 0 : index
    %71 = vector.load %arg5[%c0_63, %c0_64, %c0_65] : memref<1x64x128xbf16, #tpu.memory_space<vmem>>, vector<1x64x128xbf16>
    tpu.vector_store %arg5[%c0_63, %c0_64, %c0_65], %70 {strides = array<i32>} : memref<1x64x128xbf16, #tpu.memory_space<vmem>>, vector<1x64x128xbf16>,
    return
  }
  func.func @transform_0(%arg0: i32, %arg1: i32) -> (i32, i32, i32, i32) {
    %c0_i32 = arith.constant 0 : i32
    %c0_i32_0 = arith.constant 0 : i32
    %c0_i32_1 = arith.constant 0 : i32
    %c0_i32_2 = arith.constant 0 : i32
    return %arg0, %c0_i32, %c0_i32_0, %c0_i32_1 : i32, i32, i32, i32
  }
  func.func @transform_1(%arg0: i32, %arg1: i32) -> (i32, i32, i32) {
    %c0_i32 = arith.constant 0 : i32
    %c0_i32_0 = arith.constant 0 : i32
    %c0_i32_1 = arith.constant 0 : i32
    return %c0_i32, %c0_i32_0, %arg1 : i32, i32, i32
  }
  func.func @transform_2(%arg0: i32, %arg1: i32) -> (i32, i32) {
    %c0_i32 = arith.constant 0 : i32
    %c0_i32_0 = arith.constant 0 : i32
    return %c0_i32, %arg1 : i32, i32
  }
  func.func @transform_3(%arg0: i32, %arg1: i32) -> (i32, i32, i32) {
    %c0_i32 = arith.constant 0 : i32
    %c0_i32_0 = arith.constant 0 : i32
    return %arg0, %c0_i32, %arg1 : i32, i32, i32
  }
}

</mosaic_0001>

<llo_original>
// kernel: tpu_custom_call.1
$region0: #{tpu_custom_call.1}
  #allocation0 [shape = 'u32[]', space=smem, size = 0x4, offset = 0x4, fixed_abs, tag = 'smem constant byte address 0x4 - core index']
  #allocation1 [shape = 'u32[144,128]{1,0:T(1,128)}', space=vmem, size = 0x12000, scoped, tag = 'internal scratch']
  %s0 = inlined_call_operand.vmem [shape: bf16[2,9,9,512], index: 0, kind: input, shape index: {}]
  %s1 = inlined_call_operand.vmem [shape: bf16[9,128,128], index: 1, kind: input, shape index: {}]
  %s2 = inlined_call_operand.vmem [shape: f32[1,128], index: 2, kind: input, shape index: {}]
  %s3 = inlined_call_operand.hbm [shape: bf16[2,64,128], index: 3, kind: output, shape index: {}]
  %s4 = sld [smem:[#allocation0]]
  $region45: #{tpu_custom_call.1} parent=0
    _
  %s6 = ssub.s32 1, %s4
  %s7 = scalar_select 0, %s6, %s4
  $region1: #{tpu_custom_call.1} parent=0
    #allocation2 [shape = 'u8[32768]{0}', space=vmem, size = 0x8000, scoped, tag = 'output window, operand 0']
    #allocation3 [shape = 's32[2]{0}', space=sflag, size = 0x8, scoped, tag = 'scoped memory for tpu_custom_call.1']
    %8 = vsyncpa [#allocation3], 0
    %s9 = scalar_lea.sflag [#allocation3], 1
    %10 = vsyncpa %s9, 0
    loop: start=0, step=1, limit=4
    $region2: #{tpu_custom_call.1} parent=1 // loop_pre_header
      _
    $region3: #{tpu_custom_call.1} parent=1 // loop_header
      %s12 = sphi 0, %s16
      %p13 = scmp.ge.s32.totalorder %s12, 4
      %s19 = sphi 0, %s31
      %s20 = sphi 0, %s27
      %s21 = sphi 0, %s19
      %s22 = sphi 0, %s20
      %s23 = sphi 0, %s21
      %s24 = sphi 0, %s22
      %s34 = sphi 0, %s36
      %s37 = sphi 0, %s34
      %s38 = sphi 0, %s37
      %s54 = sphi 0, %s38
      %s60 = sphi 0, %s62
      %s63 = sphi 0, %s60
      %s64 = sphi 0, %s63
      %s80 = sphi 0, %s64
      %s86 = sphi 0, %s88
      %s89 = sphi 0, %s86
      %s90 = sphi 0, %s89
      %s106 = sphi 0, %s90
      %s114 = sphi 0, %s116
      %s117 = sphi 0, %s114
      %s118 = sphi 0, %s117
      %s134 = sphi 0, %s118
    $region4: #{tpu_custom_call.1} parent=1 // loop_header_branch
      %15 = sbr.rel (%p13) target = $region8
    $region5: #{tpu_custom_call.1} parent=1 // loop_body
      %s17 = ssub.s32 %s12, 1
      %s18 = ssub.s32 %s12, 2
      %s25 = sadd.s32 1, %s20
      %p26 = scmp.ge.s32.totalorder %s25, 1
      %s27 = scalar_select %p26, 0, %s25
      %s28 = sadd.s32 1, %s19
      %s29 = scalar_select %p26, %s28, %s19
      %p30 = scmp.ge.s32.totalorder %s29, 2
      %s31 = scalar_select %p30, 0, %s29
      %s32 = ssub.s32 %s19, %s31
      %p33 = scmp.eq.s32.totalorder %s32, 0
      %s35 = sadd.s32 %s34, 1
      %s36 = scalar_select %p33, %s34, %s35
      %p39 = pneg %p33
      %p40 = scmp.eq.s32.totalorder %s12, 1
      %p41 = por %p39, %p40
      %p42 = scmp.ne.s32.totalorder %s34, %s37
      %p43 = scmp.eq.s32.totalorder %s12, 0
      %p44 = por %p42, %p43
      %p45 = scmp.ne.s32.totalorder %s34, %s37
      %p46 = scmp.eq.s32.totalorder %s17, 1
      %p47 = por %p45, %p46
      %p48 = scmp.ne.s32.totalorder %s37, %s38
      %p49 = scmp.eq.s32.totalorder %s17, 0
      %p50 = por %p48, %p49
      %p51 = scmp.ne.s32.totalorder %s37, %s38
      %p52 = scmp.eq.s32.totalorder %s18, 1
      %p53 = por %p51, %p52
      %p55 = scmp.ne.s32.totalorder %s38, %s54
      %p56 = scmp.eq.s32.totalorder %s18, 0
      %p57 = por %p55, %p56
      %s58 = ssub.s32 %s20, %s27
      %p59 = scmp.eq.s32.totalorder %s58, 0
      %s61 = sadd.s32 %s60, 1
      %s62 = scalar_select %p59, %s60, %s61
      %p65 = pneg %p59
      %p66 = scmp.eq.s32.totalorder %s12, 1
      %p67 = por %p65, %p66
      %p68 = scmp.ne.s32.totalorder %s60, %s63
      %p69 = scmp.eq.s32.totalorder %s12, 0
      %p70 = por %p68, %p69
      %p71 = scmp.ne.s32.totalorder %s60, %s63
      %p72 = scmp.eq.s32.totalorder %s17, 1
      %p73 = por %p71, %p72
      %p74 = scmp.ne.s32.totalorder %s63, %s64
      %p75 = scmp.eq.s32.totalorder %s17, 0
      %p76 = por %p74, %p75
      %p77 = scmp.ne.s32.totalorder %s63, %s64
      %p78 = scmp.eq.s32.totalorder %s18, 1
      %p79 = por %p77, %p78
      %p81 = scmp.ne.s32.totalorder %s64, %s80
      %p82 = scmp.eq.s32.totalorder %s18, 0
      %p83 = por %p81, %p82
      %s84 = ssub.s32 %s20, %s27
      %p85 = scmp.eq.s32.totalorder %s84, 0
      %s87 = sadd.s32 %s86, 1
      %s88 = scalar_select %p85, %s86, %s87
      %p91 = pneg %p85
      %p92 = scmp.eq.s32.totalorder %s12, 1
      %p93 = por %p91, %p92
      %p94 = scmp.ne.s32.totalorder %s86, %s89
      %p95 = scmp.eq.s32.totalorder %s12, 0
      %p96 = por %p94, %p95
      %p97 = scmp.ne.s32.totalorder %s86, %s89
      %p98 = scmp.eq.s32.totalorder %s17, 1
      %p99 = por %p97, %p98
      %p100 = scmp.ne.s32.totalorder %s89, %s90
      %p101 = scmp.eq.s32.totalorder %s17, 0
      %p102 = por %p100, %p101
      %p103 = scmp.ne.s32.totalorder %s89, %s90
      %p104 = scmp.eq.s32.totalorder %s18, 1
      %p105 = por %p103, %p104
      %p107 = scmp.ne.s32.totalorder %s90, %s106
      %p108 = scmp.eq.s32.totalorder %s18, 0
      %p109 = por %p107, %p108
      %s110 = ssub.s32 %s19, %s31
      %s111 = ssub.s32 %s20, %s27
      %s112 = sor.u32 %s110, %s111
      %p113 = scmp.eq.s32.totalorder %s112, 0
      %s115 = sadd.s32 %s114, 1
      %s116 = scalar_select %p113, %s114, %s115
      %p119 = pneg %p113
      %p120 = scmp.eq.s32.totalorder %s12, 1
      %p121 = por %p119, %p120
      %p122 = scmp.ne.s32.totalorder %s114, %s117
      %p123 = scmp.eq.s32.totalorder %s12, 0
      %p124 = por %p122, %p123
      %p125 = scmp.ne.s32.totalorder %s114, %s117
      %p126 = scmp.eq.s32.totalorder %s17, 1
      %p127 = por %p125, %p126
      %p128 = scmp.ne.s32.totalorder %s117, %s118
      %p129 = scmp.eq.s32.totalorder %s17, 0
      %p130 = por %p128, %p129
      %p131 = scmp.ne.s32.totalorder %s117, %s118
      %p132 = scmp.eq.s32.totalorder %s18, 1
      %p133 = por %p131, %p132
      %p135 = scmp.ne.s32.totalorder %s118, %s134
      %p136 = scmp.eq.s32.totalorder %s18, 0
      %p137 = por %p135, %p136
      %p138 = scmp.le.s32.totalorder 1, %s12
      %p139 = scmp.lt.s32.totalorder %s12, 3
      %p140 = pnand %p138, %p139
      %p141 = pneg %p140
      // Predicated region
      $region9: #{tpu_custom_call.1} parent=5 // pred_check
        _
      $region10: #{tpu_custom_call.1} parent=5 // pred_check_branch
        %143 = sbr.rel (%p140) target = $region12
      $region11: #{tpu_custom_call.1} parent=5 // pred_region
        %s144 = ssub.s32 %s12, 1
        // Predicated region
        $region13: #{tpu_custom_call.1} parent=11 // pred_check
          %p145 = pneg %p76
        $region14: #{tpu_custom_call.1} parent=11 // pred_check_branch
          %147 = sbr.rel (%p145) target = $region16
        $region15: #{tpu_custom_call.1} parent=11 // pred_region
          %p148 = scmp.lt.s32.totalorder %s22, 0
          %s149 = scalar_select %p148, %s22, 0
          %s150 = smul.addr %s149, 4
          %s151 = scalar_lea.vmem %s1, %s150
        $region16: #{tpu_custom_call.1} parent=11 // pred_fallthru
          _
        // Predicated region
        $region17: #{tpu_custom_call.1} parent=11 // pred_check
          %p152 = pneg %p102
        $region18: #{tpu_custom_call.1} parent=11 // pred_check_branch
          %154 = sbr.rel (%p152) target = $region20
        $region19: #{tpu_custom_call.1} parent=11 // pred_region
          %p155 = scmp.lt.s32.totalorder %s22, 0
          %s156 = scalar_select %p155, %s22, 0
          %s157 = scalar_lea.vmem %s2, %s156
        $region20: #{tpu_custom_call.1} parent=11 // pred_fallthru
          _
      $region12: #{tpu_custom_call.1} parent=5 // pred_fallthru
        _
      %p158 = scmp.lt.s32.totalorder %s12, 2
      // Predicated region
      $region21: #{tpu_custom_call.1} parent=5 // pred_check
        %p159 = pneg %p158
      $region22: #{tpu_custom_call.1} parent=5 // pred_check_branch
        %161 = sbr.rel (%p159) target = $region24
      $region23: #{tpu_custom_call.1} parent=5 // pred_region
        // Predicated region
        $region25: #{tpu_custom_call.1} parent=23 // pred_check
          %p162 = pneg %p44
        $region26: #{tpu_custom_call.1} parent=23 // pred_check_branch
          %164 = sbr.rel (%p162) target = $region28
        $region27: #{tpu_custom_call.1} parent=23 // pred_region
          %p165 = scmp.lt.s32.totalorder %s19, 1
          %s166 = scalar_select %p165, %s19, 1
          %s167 = smul.addr %s166, 72
          %s168 = smul.addr %s167, 4
          %s169 = scalar_lea.vmem %s0, %s168
        $region28: #{tpu_custom_call.1} parent=23 // pred_fallthru
          _
      $region24: #{tpu_custom_call.1} parent=5 // pred_fallthru
        _
      %p170 = scmp.le.s32.totalorder 1, %s12
      %p171 = scmp.lt.s32.totalorder %s12, 3
      %p172 = pnand %p170, %p171
      %p173 = pneg %p172
      // Predicated region
      $region29: #{tpu_custom_call.1} parent=5 // pred_check
        _
      $region30: #{tpu_custom_call.1} parent=5 // pred_check_branch
        %175 = sbr.rel (%p172) target = $region32
      $region31: #{tpu_custom_call.1} parent=5 // pred_region
        %s176 = ssub.s32 %s12, 1
        %p177 = scmp.lt.s32.totalorder %s21, 1
        %s178 = scalar_select %p177, %s21, 1
        %s179 = smul.addr %s178, 72
        %s180 = smul.addr %s179, 4
        %s181 = scalar_lea.vmem %s0, %s180
        %p182 = pneg %p50
        %p183 = pneg %p47
        %p184 = scmp.lt.s32.totalorder %s22, 0
        %s185 = scalar_select %p184, %s22, 0
        %s186 = smul.addr %s185, 4
        %s187 = scalar_lea.vmem %s1, %s186
        %p188 = pneg %p76
        %p189 = pneg %p73
        %p190 = scmp.lt.s32.totalorder %s22, 0
        %s191 = scalar_select %p190, %s22, 0
        %s192 = scalar_lea.vmem %s2, %s191
        %p193 = pneg %p102
        %p194 = pneg %p99
        %p195 = pneg %p130
        %p196 = pneg %p127
        %s197 = sand.u32 %s117, 1
        %s198 = scalar_lea.sflag [#allocation3], %s197
        %s199 = sand.u32 %s117, 1
        %s200 = smul.addr %s199, 32
        %s201 = scalar_lea.vmem [#allocation2], %s200
        %p202 = scmp.lt.s32.totalorder %s21, 1
        %s203 = scalar_select %p202, %s21, 1
        %s204 = smul.addr %s203, 72
        %s205 = smul.addr %s204, 4
        %s206 = scalar_lea.vmem %s0, %s205
        %p207 = scmp.lt.s32.totalorder %s22, 0
        %s208 = scalar_select %p207, %s22, 0
        %s209 = smul.addr %s208, 4
        %s210 = scalar_lea.vmem %s1, %s209
        %p211 = scmp.lt.s32.totalorder %s22, 0
        %s212 = scalar_select %p211, %s22, 0
        %s213 = scalar_lea.vmem %s2, %s212
        %v215 = vld [vmem:[%s206] sm:$0xf]
        %v216 = vld [vmem:[%s206 + $0x20] sm:$0xf]
        %v217 = vld [vmem:[%s206 + $0x40] sm:$0xf]
        %v218 = vld [vmem:[%s206 + $0x60] sm:$0xf]
        %v219 = vld [vmem:[%s206 + $0x80] sm:$0xf]
        %v220 = vld [vmem:[%s206 + $0xa0] sm:$0xf]
        %v221 = vld [vmem:[%s206 + $0xc0] sm:$0xf]
        %v222 = vld [vmem:[%s206 + $0xe0] sm:$0xf]
        %v223 = vld [vmem:[%s210] sm:$0xf]
        %v224 = vld [vmem:[%s210 + $0x4] sm:$0xf]
        %v225 = vld [vmem:[%s210 + $0x8] sm:$0xf]
        %v226 = vld [vmem:[%s210 + $0xc] sm:$0xf]
        %v227 = vld [vmem:[%s210 + $0x10] sm:$0xf]
        %v228 = vld [vmem:[%s210 + $0x14] sm:$0xf]
        %v229 = vld [vmem:[%s210 + $0x18] sm:$0xf]
        %v230 = vld [vmem:[%s210 + $0x1c] sm:$0xf]
        %v231 = vld [vmem:[%s210 + $0x20] sm:$0xf]
        %v232 = vld [vmem:[%s210 + $0x24] sm:$0xf]
        %v233 = vld [vmem:[%s210 + $0x28] sm:$0xf]
        %v234 = vld [vmem:[%s210 + $0x2c] sm:$0xf]
        %v235 = vld [vmem:[%s210 + $0x30] sm:$0xf]
        %v236 = vld [vmem:[%s210 + $0x34] sm:$0xf]
        %v237 = vld [vmem:[%s210 + $0x38] sm:$0xf]
        %v238 = vld [vmem:[%s210 + $0x3c] sm:$0xf]
        %v239 = vld [vmem:[%s206 + $0x4] sm:$0xf]
        %v240 = vld [vmem:[%s206 + $0x24] sm:$0xf]
        %v241 = vld [vmem:[%s206 + $0x44] sm:$0xf]
        %v242 = vld [vmem:[%s206 + $0x64] sm:$0xf]
        %v243 = vld [vmem:[%s206 + $0x84] sm:$0xf]
        %v244 = vld [vmem:[%s206 + $0xa4] sm:$0xf]
        %v245 = vld [vmem:[%s206 + $0xc4] sm:$0xf]
        %v246 = vld [vmem:[%s206 + $0xe4] sm:$0xf]
        %s247 = scalar_lea.vmem %s210, 64
        %v248 = vld [vmem:[%s247] sm:$0xf]
        %v249 = vld [vmem:[%s247 + $0x4] sm:$0xf]
        %v250 = vld [vmem:[%s247 + $0x8] sm:$0xf]
        %v251 = vld [vmem:[%s247 + $0xc] sm:$0xf]
        %v252 = vld [vmem:[%s247 + $0x10] sm:$0xf]
        %v253 = vld [vmem:[%s247 + $0x14] sm:$0xf]
        %v254 = vld [vmem:[%s247 + $0x18] sm:$0xf]
        %v255 = vld [vmem:[%s247 + $0x1c] sm:$0xf]
        %v256 = vld [vmem:[%s247 + $0x20] sm:$0xf]
        %v257 = vld [vmem:[%s247 + $0x24] sm:$0xf]
        %v258 = vld [vmem:[%s247 + $0x28] sm:$0xf]
        %v259 = vld [vmem:[%s247 + $0x2c] sm:$0xf]
        %v260 = vld [vmem:[%s247 + $0x30] sm:$0xf]
        %v261 = vld [vmem:[%s247 + $0x34] sm:$0xf]
        %v262 = vld [vmem:[%s247 + $0x38] sm:$0xf]
        %v263 = vld [vmem:[%s247 + $0x3c] sm:$0xf]
        %v272 = vunpack.c.l.b16 %v239
        %v273 = vunpack.c.l.b16 %v240
        %v274 = vunpack.c.l.b16 %v241
        %v275 = vunpack.c.l.b16 %v242
        %v276 = vunpack.c.l.b16 %v243
        %v277 = vunpack.c.l.b16 %v244
        %v278 = vunpack.c.l.b16 %v245
        %v279 = vunpack.c.l.b16 %v246
        %v280 = vpack.c.b16 %v273, %v272
        %v281 = vpack.c.b16 %v275, %v274
        %v282 = vpack.c.b16 %v277, %v276
        %v283 = vpack.c.b16 %v279, %v278
        %v304 = vunpack.c.l.b16 %v248
        %v305 = vunpack.c.l.b16 %v249
        %v306 = vunpack.c.l.b16 %v250
        %v307 = vunpack.c.l.b16 %v251
        %v308 = vunpack.c.l.b16 %v252
        %v309 = vunpack.c.l.b16 %v253
        %v310 = vunpack.c.l.b16 %v254
        %v311 = vunpack.c.l.b16 %v255
        %v312 = vunpack.c.l.b16 %v256
        %v313 = vunpack.c.l.b16 %v257
        %v314 = vunpack.c.l.b16 %v258
        %v315 = vunpack.c.l.b16 %v259
        %v316 = vunpack.c.l.b16 %v260
        %v317 = vunpack.c.l.b16 %v261
        %v318 = vunpack.c.l.b16 %v262
        %v319 = vunpack.c.l.b16 %v263
        %v320 = vpack.c.b16 %v305, %v304
        %v321 = vpack.c.b16 %v307, %v306
        %v322 = vpack.c.b16 %v309, %v308
        %v323 = vpack.c.b16 %v311, %v310
        %v324 = vpack.c.b16 %v313, %v312
        %v325 = vpack.c.b16 %v315, %v314
        %v326 = vpack.c.b16 %v317, %v316
        %v327 = vpack.c.b16 %v319, %v318
        %336 = vmatprep.subr.bf16.mxu0 0
        %337 = vmatpush1.bf16.msra.mxu0 %v327
        %338 = vmatprep.subr.bf16.mxu0 0
        %339 = vmatpush1.bf16.msra.mxu0 %v326
        %340 = vmatprep.subr.bf16.mxu0 0
        %341 = vmatpush1.bf16.msra.mxu0 %v325
        %342 = vmatprep.subr.bf16.mxu0 0
        %343 = vmatpush1.bf16.msra.mxu0 %v324
        %344 = vmatprep.subr.bf16.mxu0 0
        %345 = vmatpush1.bf16.msra.mxu0 %v323
        %346 = vmatprep.subr.bf16.mxu0 0
        %347 = vmatpush1.bf16.msra.mxu0 %v322
        %348 = vmatprep.subr.bf16.mxu0 0
        %349 = vmatpush1.bf16.msra.mxu0 %v321
        %350 = vmatprep.subr.bf16.mxu0 0
        %351 = vmatpush1.bf16.msra.mxu0 %v320
        %352 = vmatprep.subr.bf16.mxu0 0
        %353 = vmatpush2.bf16.msra.mxu0 0
        %354 = vmatprep.subr.bf16.mxu0 0
        %355 = vmatpush2.bf16.msra.mxu0 0
        %356 = vmatprep.subr.bf16.mxu0 0
        %357 = vmatpush2.bf16.msra.mxu0 0
        %358 = vmatprep.subr.bf16.mxu0 0
        %359 = vmatpush2.bf16.msra.mxu0 0
        %360 = vmatprep.subr.bf16.mxu0 0
        %361 = vmatpush2.bf16.msra.mxu0 0
        %362 = vmatprep.subr.bf16.mxu0 0
        %363 = vmatpush2.bf16.msra.mxu0 0
        %364 = vmatprep.subr.bf16.mxu0 0
        %365 = vmatpush2.bf16.msra.mxu0 0
        %366 = vmatprep.subr.bf16.mxu0 0
        %367 = vmatpush2.bf16.msra.mxu0 0
        %368 = vmatprep.mubr.bf16.mxu0 0
        %369 = vmatmul.mubr.bf16.gmra.mxu0 %v280
        %v370 = vpop.f32.mrf.mxu0
        %v371 = vadd.f32 0.0, %v370
        %v372 = vpop.f32.mrf.mxu0
        %v373 = vpop.f32.mrf.mxu0
        %v374 = vadd.f32 0.0, %v373
        %v375 = vpop.f32.mrf.mxu0
        %376 = vmatprep.mubr.bf16.mxu0 0
        %377 = vmatmul.mubr.bf16.gmra.mxu0 %v281
        %v378 = vpop.f32.mrf.mxu0
        %v379 = vadd.f32 0.0, %v378
        %v380 = vpop.f32.mrf.mxu0
        %v381 = vpop.f32.mrf.mxu0
        %v382 = vadd.f32 0.0, %v381
        %v383 = vpop.f32.mrf.mxu0
        %384 = vmatprep.mubr.bf16.mxu0 0
        %385 = vmatmul.mubr.bf16.gmra.mxu0 %v282
        %v386 = vpop.f32.mrf.mxu0
        %v387 = vadd.f32 0.0, %v386
        %v388 = vpop.f32.mrf.mxu0
        %v389 = vpop.f32.mrf.mxu0
        %v390 = vadd.f32 0.0, %v389
        %v391 = vpop.f32.mrf.mxu0
        %392 = vmatprep.mubr.bf16.mxu0 0
        %393 = vmatmul.mubr.bf16.gmra.mxu0 %v283
        %v394 = vpop.f32.mrf.mxu0
        %v395 = vadd.f32 0.0, %v394
        %v396 = vpop.f32.mrf.mxu0
        %v397 = vpop.f32.mrf.mxu0
        %v398 = vadd.f32 0.0, %v397
        %v399 = vpop.f32.mrf.mxu0
        %400 = vdwg.mxu0
        %v409 = vunpack.c.l.b16 %v215
        %v410 = vunpack.c.l.b16 %v216
        %v411 = vunpack.c.l.b16 %v217
        %v412 = vunpack.c.l.b16 %v218
        %v413 = vunpack.c.l.b16 %v219
        %v414 = vunpack.c.l.b16 %v220
        %v415 = vunpack.c.l.b16 %v221
        %v416 = vunpack.c.l.b16 %v222
        %v417 = vpack.c.b16 %v410, %v409
        %v418 = vpack.c.b16 %v412, %v411
        %v419 = vpack.c.b16 %v414, %v413
        %v420 = vpack.c.b16 %v416, %v415
        %v441 = vunpack.c.l.b16 %v223
        %v442 = vunpack.c.l.b16 %v224
        %v443 = vunpack.c.l.b16 %v225
        %v444 = vunpack.c.l.b16 %v226
        %v445 = vunpack.c.l.b16 %v227
        %v446 = vunpack.c.l.b16 %v228
        %v447 = vunpack.c.l.b16 %v229
        %v448 = vunpack.c.l.b16 %v230
        %v449 = vunpack.c.l.b16 %v231
        %v450 = vunpack.c.l.b16 %v232
        %v451 = vunpack.c.l.b16 %v233
        %v452 = vunpack.c.l.b16 %v234
        %v453 = vunpack.c.l.b16 %v235
        %v454 = vunpack.c.l.b16 %v236
        %v455 = vunpack.c.l.b16 %v237
        %v456 = vunpack.c.l.b16 %v238
        %v457 = vpack.c.b16 %v442, %v441
        %v458 = vpack.c.b16 %v444, %v443
        %v459 = vpack.c.b16 %v446, %v445
        %v460 = vpack.c.b16 %v448, %v447
        %v461 = vpack.c.b16 %v450, %v449
        %v462 = vpack.c.b16 %v452, %v451
        %v463 = vpack.c.b16 %v454, %v453
        %v464 = vpack.c.b16 %v456, %v455
        %473 = vmatprep.subr.bf16.mxu0 0
        %474 = vmatpush1.bf16.msra.mxu0 %v464
        %475 = vmatprep.subr.bf16.mxu0 0
        %476 = vmatpush1.bf16.msra.mxu0 %v463
        %477 = vmatprep.subr.bf16.mxu0 0
        %478 = vmatpush1.bf16.msra.mxu0 %v462
        %479 = vmatprep.subr.bf16.mxu0 0
        %480 = vmatpush1.bf16.msra.mxu0 %v461
        %481 = vmatprep.subr.bf16.mxu0 0
        %482 = vmatpush1.bf16.msra.mxu0 %v460
        %483 = vmatprep.subr.bf16.mxu0 0
        %484 = vmatpush1.bf16.msra.mxu0 %v459
        %485 = vmatprep.subr.bf16.mxu0 0
        %486 = vmatpush1.bf16.msra.mxu0 %v458
        %487 = vmatprep.subr.bf16.mxu0 0
        %488 = vmatpush1.bf16.msra.mxu0 %v457
        %489 = vmatprep.subr.bf16.mxu0 0
        %490 = vmatpush2.bf16.msra.mxu0 0
        %491 = vmatprep.subr.bf16.mxu0 0
        %492 = vmatpush2.bf16.msra.mxu0 0
        %493 = vmatprep.subr.bf16.mxu0 0
        %494 = vmatpush2.bf16.msra.mxu0 0
        %495 = vmatprep.subr.bf16.mxu0 0
        %496 = vmatpush2.bf16.msra.mxu0 0
        %497 = vmatprep.subr.bf16.mxu0 0
        %498 = vmatpush2.bf16.msra.mxu0 0
        %499 = vmatprep.subr.bf16.mxu0 0
        %500 = vmatpush2.bf16.msra.mxu0 0
        %501 = vmatprep.subr.bf16.mxu0 0
        %502 = vmatpush2.bf16.msra.mxu0 0
        %503 = vmatprep.subr.bf16.mxu0 0
        %504 = vmatpush2.bf16.msra.mxu0 0
        %505 = vmatprep.mubr.bf16.mxu0 0
        %506 = vmatmul.mubr.bf16.gmra.mxu0 %v417
        %v507 = vpop.f32.mrf.mxu0
        %v508 = vadd.f32 %v371, %v507
        %v509 = vpop.f32.mrf.mxu0
        %v510 = vpop.f32.mrf.mxu0
        %v511 = vadd.f32 %v374, %v510
        %v512 = vpop.f32.mrf.mxu0
        %513 = vmatprep.mubr.bf16.mxu0 0
        %514 = vmatmul.mubr.bf16.gmra.mxu0 %v418
        %v515 = vpop.f32.mrf.mxu0
        %v516 = vadd.f32 %v379, %v515
        %v517 = vpop.f32.mrf.mxu0
        %v518 = vpop.f32.mrf.mxu0
        %v519 = vadd.f32 %v382, %v518
        %v520 = vpop.f32.mrf.mxu0
        %521 = vmatprep.mubr.bf16.mxu0 0
        %522 = vmatmul.mubr.bf16.gmra.mxu0 %v419
        %v523 = vpop.f32.mrf.mxu0
        %v524 = vadd.f32 %v387, %v523
        %v525 = vpop.f32.mrf.mxu0
        %v526 = vpop.f32.mrf.mxu0
        %v527 = vadd.f32 %v390, %v526
        %v528 = vpop.f32.mrf.mxu0
        %529 = vmatprep.mubr.bf16.mxu0 0
        %530 = vmatmul.mubr.bf16.gmra.mxu0 %v420
        %v531 = vpop.f32.mrf.mxu0
        %v532 = vadd.f32 %v395, %v531
        %v533 = vpop.f32.mrf.mxu0
        %v534 = vpop.f32.mrf.mxu0
        %v535 = vadd.f32 %v398, %v534
        %v536 = vpop.f32.mrf.mxu0
        %537 = vdwg.mxu0
        %v538 = vld [vmem:[%s206] sm:$0xf]
        %v539 = vld [vmem:[%s206 + $0x10] sm:$0x1]
        %v540 = vld [vmem:[%s206 + $0x20] sm:$0xf]
        %v541 = vld [vmem:[%s206 + $0x30] sm:$0x1]
        %v542 = vld [vmem:[%s206 + $0x40] sm:$0xf]
        %v543 = vld [vmem:[%s206 + $0x50] sm:$0x1]
        %v544 = vld [vmem:[%s206 + $0x60] sm:$0xf]
        %v545 = vld [vmem:[%s206 + $0x70] sm:$0x1]
        %v546 = vld [vmem:[%s206 + $0x80] sm:$0xf]
        %v547 = vld [vmem:[%s206 + $0x90] sm:$0x1]
        %v548 = vld [vmem:[%s206 + $0xa0] sm:$0xf]
        %v549 = vld [vmem:[%s206 + $0xb0] sm:$0x1]
        %v550 = vld [vmem:[%s206 + $0xc0] sm:$0xf]
        %v551 = vld [vmem:[%s206 + $0xd0] sm:$0x1]
        %v552 = vld [vmem:[%s206 + $0xe0] sm:$0xf]
        %v553 = vld [vmem:[%s206 + $0xf0] sm:$0x1]
        %vm554 = vsmask.f32 3328
        %vm555 = vsmask.f32 7440
        %vm556 = vmor %vm554, %vm555
        %v558 = vshrl.u32 %v538, 16
        %v560 = vrot.slane %v558, 4
        %v561 = vshll.u32 %v538, 16
        %v563 = vrot.slane %v561, 5
        %v564 = vor.u32 %v560, %v563
        %v565 = vrot.slane %v564, 4
        %v567 = vshll.u32 %v539, 16
        %v569 = vrot.slane %v567, 5
        %v570 = vsel %vm556, %v565, %v569
        %v572 = vshrl.u32 %v540, 16
        %v574 = vrot.slane %v572, 4
        %v575 = vshll.u32 %v540, 16
        %v577 = vrot.slane %v575, 5
        %v578 = vor.u32 %v574, %v577
        %v579 = vrot.slane %v578, 4
        %v581 = vshll.u32 %v541, 16
        %v583 = vrot.slane %v581, 5
        %v584 = vsel %vm556, %v579, %v583
        %v586 = vshrl.u32 %v542, 16
        %v588 = vrot.slane %v586, 4
        %v589 = vshll.u32 %v542, 16
        %v591 = vrot.slane %v589, 5
        %v592 = vor.u32 %v588, %v591
        %v593 = vrot.slane %v592, 4
        %v595 = vshll.u32 %v543, 16
        %v597 = vrot.slane %v595, 5
        %v598 = vsel %vm556, %v593, %v597
        %v600 = vshrl.u32 %v544, 16
        %v602 = vrot.slane %v600, 4
        %v603 = vshll.u32 %v544, 16
        %v605 = vrot.slane %v603, 5
        %v606 = vor.u32 %v602, %v605
        %v607 = vrot.slane %v606, 4
        %v609 = vshll.u32 %v545, 16
        %v611 = vrot.slane %v609, 5
        %v612 = vsel %vm556, %v607, %v611
        %v614 = vshrl.u32 %v546, 16
        %v616 = vrot.slane %v614, 4
        %v617 = vshll.u32 %v546, 16
        %v619 = vrot.slane %v617, 5
        %v620 = vor.u32 %v616, %v619
        %v621 = vrot.slane %v620, 4
        %v623 = vshll.u32 %v547, 16
        %v625 = vrot.slane %v623, 5
        %v626 = vsel %vm556, %v621, %v625
        %v628 = vshrl.u32 %v548, 16
        %v630 = vrot.slane %v628, 4
        %v631 = vshll.u32 %v548, 16
        %v633 = vrot.slane %v631, 5
        %v634 = vor.u32 %v630, %v633
        %v635 = vrot.slane %v634, 4
        %v637 = vshll.u32 %v549, 16
        %v639 = vrot.slane %v637, 5
        %v640 = vsel %vm556, %v635, %v639
        %v642 = vshrl.u32 %v550, 16
        %v644 = vrot.slane %v642, 4
        %v645 = vshll.u32 %v550, 16
        %v647 = vrot.slane %v645, 5
        %v648 = vor.u32 %v644, %v647
        %v649 = vrot.slane %v648, 4
        %v651 = vshll.u32 %v551, 16
        %v653 = vrot.slane %v651, 5
        %v654 = vsel %vm556, %v649, %v653
        %v656 = vshrl.u32 %v552, 16
        %v658 = vrot.slane %v656, 4
        %v659 = vshll.u32 %v552, 16
        %v661 = vrot.slane %v659, 5
        %v662 = vor.u32 %v658, %v661
        %v663 = vrot.slane %v662, 4
        %v665 = vshll.u32 %v553, 16
        %v667 = vrot.slane %v665, 5
        %v668 = vsel %vm556, %v663, %v667
        %s669 = scalar_lea.vmem %s210, 128
        %v670 = vld [vmem:[%s669] sm:$0xf]
        %v671 = vld [vmem:[%s669 + $0x4] sm:$0xf]
        %v672 = vld [vmem:[%s669 + $0x8] sm:$0xf]
        %v673 = vld [vmem:[%s669 + $0xc] sm:$0xf]
        %v674 = vld [vmem:[%s669 + $0x10] sm:$0xf]
        %v675 = vld [vmem:[%s669 + $0x14] sm:$0xf]
        %v676 = vld [vmem:[%s669 + $0x18] sm:$0xf]
        %v677 = vld [vmem:[%s669 + $0x1c] sm:$0xf]
        %v678 = vld [vmem:[%s669 + $0x20] sm:$0xf]
        %v679 = vld [vmem:[%s669 + $0x24] sm:$0xf]
        %v680 = vld [vmem:[%s669 + $0x28] sm:$0xf]
        %v681 = vld [vmem:[%s669 + $0x2c] sm:$0xf]
        %v682 = vld [vmem:[%s669 + $0x30] sm:$0xf]
        %v683 = vld [vmem:[%s669 + $0x34] sm:$0xf]
        %v684 = vld [vmem:[%s669 + $0x38] sm:$0xf]
        %v685 = vld [vmem:[%s669 + $0x3c] sm:$0xf]
        %v686 = vunpack.c.l.b16 %v570
        %v687 = vunpack.c.l.b16 %v584
        %v688 = vunpack.c.l.b16 %v598
        %v689 = vunpack.c.l.b16 %v612
        %v690 = vunpack.c.l.b16 %v626
        %v691 = vunpack.c.l.b16 %v640
        %v692 = vunpack.c.l.b16 %v654
        %v693 = vunpack.c.l.b16 %v668
        %v694 = vpack.c.b16 %v687, %v686
        %v695 = vpack.c.b16 %v689, %v688
        %v696 = vpack.c.b16 %v691, %v690
        %v697 = vpack.c.b16 %v693, %v692
        %v718 = vunpack.c.l.b16 %v670
        %v719 = vunpack.c.l.b16 %v671
        %v720 = vunpack.c.l.b16 %v672
        %v721 = vunpack.c.l.b16 %v673
        %v722 = vunpack.c.l.b16 %v674
        %v723 = vunpack.c.l.b16 %v675
        %v724 = vunpack.c.l.b16 %v676
        %v725 = vunpack.c.l.b16 %v677
        %v726 = vunpack.c.l.b16 %v678
        %v727 = vunpack.c.l.b16 %v679
        %v728 = vunpack.c.l.b16 %v680
        %v729 = vunpack.c.l.b16 %v681
        %v730 = vunpack.c.l.b16 %v682
        %v731 = vunpack.c.l.b16 %v683
        %v732 = vunpack.c.l.b16 %v684
        %v733 = vunpack.c.l.b16 %v685
        %v734 = vpack.c.b16 %v719, %v718
        %v735 = vpack.c.b16 %v721, %v720
        %v736 = vpack.c.b16 %v723, %v722
        %v737 = vpack.c.b16 %v725, %v724
        %v738 = vpack.c.b16 %v727, %v726
        %v739 = vpack.c.b16 %v729, %v728
        %v740 = vpack.c.b16 %v731, %v730
        %v741 = vpack.c.b16 %v733, %v732
        %750 = vmatprep.subr.bf16.mxu0 0
        %751 = vmatpush1.bf16.msra.mxu0 %v741
        %752 = vmatprep.subr.bf16.mxu0 0
        %753 = vmatpush1.bf16.msra.mxu0 %v740
        %754 = vmatprep.subr.bf16.mxu0 0
        %755 = vmatpush1.bf16.msra.mxu0 %v739
        %756 = vmatprep.subr.bf16.mxu0 0
        %757 = vmatpush1.bf16.msra.mxu0 %v738
        %758 = vmatprep.subr.bf16.mxu0 0
        %759 = vmatpush1.bf16.msra.mxu0 %v737
        %760 = vmatprep.subr.bf16.mxu0 0
        %761 = vmatpush1.bf16.msra.mxu0 %v736
        %762 = vmatprep.subr.bf16.mxu0 0
        %763 = vmatpush1.bf16.msra.mxu0 %v735
        %764 = vmatprep.subr.bf16.mxu0 0
        %765 = vmatpush1.bf16.msra.mxu0 %v734
        %766 = vmatprep.subr.bf16.mxu0 0
        %767 = vmatpush2.bf16.msra.mxu0 0
        %768 = vmatprep.subr.bf16.mxu0 0
        %769 = vmatpush2.bf16.msra.mxu0 0
        %770 = vmatprep.subr.bf16.mxu0 0
        %771 = vmatpush2.bf16.msra.mxu0 0
        %772 = vmatprep.subr.bf16.mxu0 0
        %773 = vmatpush2.bf16.msra.mxu0 0
        %774 = vmatprep.subr.bf16.mxu0 0
        %775 = vmatpush2.bf16.msra.mxu0 0
        %776 = vmatprep.subr.bf16.mxu0 0
        %777 = vmatpush2.bf16.msra.mxu0 0
        %778 = vmatprep.subr.bf16.mxu0 0
        %779 = vmatpush2.bf16.msra.mxu0 0
        %780 = vmatprep.subr.bf16.mxu0 0
        %781 = vmatpush2.bf16.msra.mxu0 0
        %782 = vmatprep.mubr.bf16.mxu0 0
        %783 = vmatmul.mubr.bf16.gmra.mxu0 %v694
        %v784 = vpop.f32.mrf.mxu0
        %v785 = vadd.f32 0.0, %v784
        %v786 = vpop.f32.mrf.mxu0
        %v787 = vpop.f32.mrf.mxu0
        %v788 = vadd.f32 0.0, %v787
        %v789 = vpop.f32.mrf.mxu0
        %790 = vmatprep.mubr.bf16.mxu0 0
        %791 = vmatmul.mubr.bf16.gmra.mxu0 %v695
        %v792 = vpop.f32.mrf.mxu0
        %v793 = vadd.f32 0.0, %v792
        %v794 = vpop.f32.mrf.mxu0
        %v795 = vpop.f32.mrf.mxu0
        %v796 = vadd.f32 0.0, %v795
        %v797 = vpop.f32.mrf.mxu0
        %798 = vmatprep.mubr.bf16.mxu0 0
        %799 = vmatmul.mubr.bf16.gmra.mxu0 %v696
        %v800 = vpop.f32.mrf.mxu0
        %v801 = vadd.f32 0.0, %v800
        %v802 = vpop.f32.mrf.mxu0
        %v803 = vpop.f32.mrf.mxu0
        %v804 = vadd.f32 0.0, %v803
        %v805 = vpop.f32.mrf.mxu0
        %806 = vmatprep.mubr.bf16.mxu0 0
        %807 = vmatmul.mubr.bf16.gmra.mxu0 %v697
        %v808 = vpop.f32.mrf.mxu0
        %v809 = vadd.f32 0.0, %v808
        %v810 = vpop.f32.mrf.mxu0
        %v811 = vpop.f32.mrf.mxu0
        %v812 = vadd.f32 0.0, %v811
        %v813 = vpop.f32.mrf.mxu0
        %814 = vdwg.mxu0
        %v815 = vadd.f32 %v508, %v785
        %v816 = vadd.f32 %v511, %v788
        %v817 = vadd.f32 %v516, %v793
        %v818 = vadd.f32 %v519, %v796
        %v819 = vadd.f32 %v524, %v801
        %v820 = vadd.f32 %v527, %v804
        %v821 = vadd.f32 %v532, %v809
        %v822 = vadd.f32 %v535, %v812
        %v823 = vld [vmem:[%s206 + $0x8] sm:$0xf]
        %v824 = vld [vmem:[%s206 + $0x28] sm:$0xf]
        %v825 = vld [vmem:[%s206 + $0x48] sm:$0xf]
        %v826 = vld [vmem:[%s206 + $0x68] sm:$0xf]
        %v827 = vld [vmem:[%s206 + $0x88] sm:$0xf]
        %v828 = vld [vmem:[%s206 + $0xa8] sm:$0xf]
        %v829 = vld [vmem:[%s206 + $0xc8] sm:$0xf]
        %v830 = vld [vmem:[%s206 + $0xe8] sm:$0xf]
        %s831 = scalar_lea.vmem %s210, 192
        %v832 = vld [vmem:[%s831] sm:$0xf]
        %v833 = vld [vmem:[%s831 + $0x4] sm:$0xf]
        %v834 = vld [vmem:[%s831 + $0x8] sm:$0xf]
        %v835 = vld [vmem:[%s831 + $0xc] sm:$0xf]
        %v836 = vld [vmem:[%s831 + $0x10] sm:$0xf]
        %v837 = vld [vmem:[%s831 + $0x14] sm:$0xf]
        %v838 = vld [vmem:[%s831 + $0x18] sm:$0xf]
        %v839 = vld [vmem:[%s831 + $0x1c] sm:$0xf]
        %v840 = vld [vmem:[%s831 + $0x20] sm:$0xf]
        %v841 = vld [vmem:[%s831 + $0x24] sm:$0xf]
        %v842 = vld [vmem:[%s831 + $0x28] sm:$0xf]
        %v843 = vld [vmem:[%s831 + $0x2c] sm:$0xf]
        %v844 = vld [vmem:[%s831 + $0x30] sm:$0xf]
        %v845 = vld [vmem:[%s831 + $0x34] sm:$0xf]
        %v846 = vld [vmem:[%s831 + $0x38] sm:$0xf]
        %v847 = vld [vmem:[%s831 + $0x3c] sm:$0xf]
        %v856 = vunpack.c.l.b16 %v823
        %v857 = vunpack.c.l.b16 %v824
        %v858 = vunpack.c.l.b16 %v825
        %v859 = vunpack.c.l.b16 %v826
        %v860 = vunpack.c.l.b16 %v827
        %v861 = vunpack.c.l.b16 %v828
        %v862 = vunpack.c.l.b16 %v829
        %v863 = vunpack.c.l.b16 %v830
        %v864 = vpack.c.b16 %v857, %v856
        %v865 = vpack.c.b16 %v859, %v858
        %v866 = vpack.c.b16 %v861, %v860
        %v867 = vpack.c.b16 %v863, %v862
        %v888 = vunpack.c.l.b16 %v832
        %v889 = vunpack.c.l.b16 %v833
        %v890 = vunpack.c.l.b16 %v834
        %v891 = vunpack.c.l.b16 %v835
        %v892 = vunpack.c.l.b16 %v836
        %v893 = vunpack.c.l.b16 %v837
        %v894 = vunpack.c.l.b16 %v838
        %v895 = vunpack.c.l.b16 %v839
        %v896 = vunpack.c.l.b16 %v840
        %v897 = vunpack.c.l.b16 %v841
        %v898 = vunpack.c.l.b16 %v842
        %v899 = vunpack.c.l.b16 %v843
        %v900 = vunpack.c.l.b16 %v844
        %v901 = vunpack.c.l.b16 %v845
        %v902 = vunpack.c.l.b16 %v846
        %v903 = vunpack.c.l.b16 %v847
        %v904 = vpack.c.b16 %v889, %v888
        %v905 = vpack.c.b16 %v891, %v890
        %v906 = vpack.c.b16 %v893, %v892
        %v907 = vpack.c.b16 %v895, %v894
        %v908 = vpack.c.b16 %v897, %v896
        %v909 = vpack.c.b16 %v899, %v898
        %v910 = vpack.c.b16 %v901, %v900
        %v911 = vpack.c.b16 %v903, %v902
        %920 = vmatprep.subr.bf16.mxu0 0
        %921 = vmatpush1.bf16.msra.mxu0 %v911
        %922 = vmatprep.subr.bf16.mxu0 0
        %923 = vmatpush1.bf16.msra.mxu0 %v910
        %924 = vmatprep.subr.bf16.mxu0 0
        %925 = vmatpush1.bf16.msra.mxu0 %v909
        %926 = vmatprep.subr.bf16.mxu0 0
        %927 = vmatpush1.bf16.msra.mxu0 %v908
        %928 = vmatprep.subr.bf16.mxu0 0
        %929 = vmatpush1.bf16.msra.mxu0 %v907
        %930 = vmatprep.subr.bf16.mxu0 0
        %931 = vmatpush1.bf16.msra.mxu0 %v906
        %932 = vmatprep.subr.bf16.mxu0 0
        %933 = vmatpush1.bf16.msra.mxu0 %v905
        %934 = vmatprep.subr.bf16.mxu0 0
        %935 = vmatpush1.bf16.msra.mxu0 %v904
        %936 = vmatprep.subr.bf16.mxu0 0
        %937 = vmatpush2.bf16.msra.mxu0 0
        %938 = vmatprep.subr.bf16.mxu0 0
        %939 = vmatpush2.bf16.msra.mxu0 0
        %940 = vmatprep.subr.bf16.mxu0 0
        %941 = vmatpush2.bf16.msra.mxu0 0
        %942 = vmatprep.subr.bf16.mxu0 0
        %943 = vmatpush2.bf16.msra.mxu0 0
        %944 = vmatprep.subr.bf16.mxu0 0
        %945 = vmatpush2.bf16.msra.mxu0 0
        %946 = vmatprep.subr.bf16.mxu0 0
        %947 = vmatpush2.bf16.msra.mxu0 0
        %948 = vmatprep.subr.bf16.mxu0 0
        %949 = vmatpush2.bf16.msra.mxu0 0
        %950 = vmatprep.subr.bf16.mxu0 0
        %951 = vmatpush2.bf16.msra.mxu0 0
        %952 = vmatprep.mubr.bf16.mxu0 0
        %953 = vmatmul.mubr.bf16.gmra.mxu0 %v864
        %v954 = vpop.f32.mrf.mxu0
        %v955 = vadd.f32 0.0, %v954
        %v956 = vpop.f32.mrf.mxu0
        %v957 = vpop.f32.mrf.mxu0
        %v958 = vadd.f32 0.0, %v957
        %v959 = vpop.f32.mrf.mxu0
        %960 = vmatprep.mubr.bf16.mxu0 0
        %961 = vmatmul.mubr.bf16.gmra.mxu0 %v865
        %v962 = vpop.f32.mrf.mxu0
        %v963 = vadd.f32 0.0, %v962
        %v964 = vpop.f32.mrf.mxu0
        %v965 = vpop.f32.mrf.mxu0
        %v966 = vadd.f32 0.0, %v965
        %v967 = vpop.f32.mrf.mxu0
        %968 = vmatprep.mubr.bf16.mxu0 0
        %969 = vmatmul.mubr.bf16.gmra.mxu0 %v866
        %v970 = vpop.f32.mrf.mxu0
        %v971 = vadd.f32 0.0, %v970
        %v972 = vpop.f32.mrf.mxu0
        %v973 = vpop.f32.mrf.mxu0
        %v974 = vadd.f32 0.0, %v973
        %v975 = vpop.f32.mrf.mxu0
        %976 = vmatprep.mubr.bf16.mxu0 0
        %977 = vmatmul.mubr.bf16.gmra.mxu0 %v867
        %v978 = vpop.f32.mrf.mxu0
        %v979 = vadd.f32 0.0, %v978
        %v980 = vpop.f32.mrf.mxu0
        %v981 = vpop.f32.mrf.mxu0
        %v982 = vadd.f32 0.0, %v981
        %v983 = vpop.f32.mrf.mxu0
        %984 = vdwg.mxu0
        %v985 = vadd.f32 %v815, %v955
        %v986 = vadd.f32 %v816, %v958
        %v987 = vadd.f32 %v817, %v963
        %v988 = vadd.f32 %v818, %v966
        %v989 = vadd.f32 %v819, %v971
        %v990 = vadd.f32 %v820, %v974
        %v991 = vadd.f32 %v821, %v979
        %v992 = vadd.f32 %v822, %v982
        %v993 = vld [vmem:[%s206 + $0xc] sm:$0xf]
        %v994 = vld [vmem:[%s206 + $0x2c] sm:$0xf]
        %v995 = vld [vmem:[%s206 + $0x4c] sm:$0xf]
        %v996 = vld [vmem:[%s206 + $0x6c] sm:$0xf]
        %v997 = vld [vmem:[%s206 + $0x8c] sm:$0xf]
        %v998 = vld [vmem:[%s206 + $0xac] sm:$0xf]
        %v999 = vld [vmem:[%s206 + $0xcc] sm:$0xf]
        %v1000 = vld [vmem:[%s206 + $0xec] sm:$0xf]
        %s1001 = scalar_lea.vmem %s210, 256
        %v1002 = vld [vmem:[%s1001] sm:$0xf]
        %v1003 = vld [vmem:[%s1001 + $0x4] sm:$0xf]
        %v1004 = vld [vmem:[%s1001 + $0x8] sm:$0xf]
        %v1005 = vld [vmem:[%s1001 + $0xc] sm:$0xf]
        %v1006 = vld [vmem:[%s1001 + $0x10] sm:$0xf]
        %v1007 = vld [vmem:[%s1001 + $0x14] sm:$0xf]
        %v1008 = vld [vmem:[%s1001 + $0x18] sm:$0xf]
        %v1009 = vld [vmem:[%s1001 + $0x1c] sm:$0xf]
        %v1010 = vld [vmem:[%s1001 + $0x20] sm:$0xf]
        %v1011 = vld [vmem:[%s1001 + $0x24] sm:$0xf]
        %v1012 = vld [vmem:[%s1001 + $0x28] sm:$0xf]
        %v1013 = vld [vmem:[%s1001 + $0x2c] sm:$0xf]
        %v1014 = vld [vmem:[%s1001 + $0x30] sm:$0xf]
        %v1015 = vld [vmem:[%s1001 + $0x34] sm:$0xf]
        %v1016 = vld [vmem:[%s1001 + $0x38] sm:$0xf]
        %v1017 = vld [vmem:[%s1001 + $0x3c] sm:$0xf]
        %v1026 = vunpack.c.l.b16 %v993
        %v1027 = vunpack.c.l.b16 %v994
        %v1028 = vunpack.c.l.b16 %v995
        %v1029 = vunpack.c.l.b16 %v996
        %v1030 = vunpack.c.l.b16 %v997
        %v1031 = vunpack.c.l.b16 %v998
        %v1032 = vunpack.c.l.b16 %v999
        %v1033 = vunpack.c.l.b16 %v1000
        %v1034 = vpack.c.b16 %v1027, %v1026
        %v1035 = vpack.c.b16 %v1029, %v1028
        %v1036 = vpack.c.b16 %v1031, %v1030
        %v1037 = vpack.c.b16 %v1033, %v1032
        %v1058 = vunpack.c.l.b16 %v1002
        %v1059 = vunpack.c.l.b16 %v1003
        %v1060 = vunpack.c.l.b16 %v1004
        %v1061 = vunpack.c.l.b16 %v1005
        %v1062 = vunpack.c.l.b16 %v1006
        %v1063 = vunpack.c.l.b16 %v1007
        %v1064 = vunpack.c.l.b16 %v1008
        %v1065 = vunpack.c.l.b16 %v1009
        %v1066 = vunpack.c.l.b16 %v1010
        %v1067 = vunpack.c.l.b16 %v1011
        %v1068 = vunpack.c.l.b16 %v1012
        %v1069 = vunpack.c.l.b16 %v1013
        %v1070 = vunpack.c.l.b16 %v1014
        %v1071 = vunpack.c.l.b16 %v1015
        %v1072 = vunpack.c.l.b16 %v1016
        %v1073 = vunpack.c.l.b16 %v1017
        %v1074 = vpack.c.b16 %v1059, %v1058
        %v1075 = vpack.c.b16 %v1061, %v1060
        %v1076 = vpack.c.b16 %v1063, %v1062
        %v1077 = vpack.c.b16 %v1065, %v1064
        %v1078 = vpack.c.b16 %v1067, %v1066
        %v1079 = vpack.c.b16 %v1069, %v1068
        %v1080 = vpack.c.b16 %v1071, %v1070
        %v1081 = vpack.c.b16 %v1073, %v1072
        %1090 = vmatprep.subr.bf16.mxu0 0
        %1091 = vmatpush1.bf16.msra.mxu0 %v1081
        %1092 = vmatprep.subr.bf16.mxu0 0
        %1093 = vmatpush1.bf16.msra.mxu0 %v1080
        %1094 = vmatprep.subr.bf16.mxu0 0
        %1095 = vmatpush1.bf16.msra.mxu0 %v1079
        %1096 = vmatprep.subr.bf16.mxu0 0
        %1097 = vmatpush1.bf16.msra.mxu0 %v1078
        %1098 = vmatprep.subr.bf16.mxu0 0
        %1099 = vmatpush1.bf16.msra.mxu0 %v1077
        %1100 = vmatprep.subr.bf16.mxu0 0
        %1101 = vmatpush1.bf16.msra.mxu0 %v1076
        %1102 = vmatprep.subr.bf16.mxu0 0
        %1103 = vmatpush1.bf16.msra.mxu0 %v1075
        %1104 = vmatprep.subr.bf16.mxu0 0
        %1105 = vmatpush1.bf16.msra.mxu0 %v1074
        %1106 = vmatprep.subr.bf16.mxu0 0
        %1107 = vmatpush2.bf16.msra.mxu0 0
        %1108 = vmatprep.subr.bf16.mxu0 0
        %1109 = vmatpush2.bf16.msra.mxu0 0
        %1110 = vmatprep.subr.bf16.mxu0 0
        %1111 = vmatpush2.bf16.msra.mxu0 0
        %1112 = vmatprep.subr.bf16.mxu0 0
        %1113 = vmatpush2.bf16.msra.mxu0 0
        %1114 = vmatprep.subr.bf16.mxu0 0
        %1115 = vmatpush2.bf16.msra.mxu0 0
        %1116 = vmatprep.subr.bf16.mxu0 0
        %1117 = vmatpush2.bf16.msra.mxu0 0
        %1118 = vmatprep.subr.bf16.mxu0 0
        %1119 = vmatpush2.bf16.msra.mxu0 0
        %1120 = vmatprep.subr.bf16.mxu0 0
        %1121 = vmatpush2.bf16.msra.mxu0 0
        %1122 = vmatprep.mubr.bf16.mxu0 0
        %1123 = vmatmul.mubr.bf16.gmra.mxu0 %v1034
        %v1124 = vpop.f32.mrf.mxu0
        %v1125 = vadd.f32 0.0, %v1124
        %v1126 = vpop.f32.mrf.mxu0
        %v1127 = vpop.f32.mrf.mxu0
        %v1128 = vadd.f32 0.0, %v1127
        %v1129 = vpop.f32.mrf.mxu0
        %1130 = vmatprep.mubr.bf16.mxu0 0
        %1131 = vmatmul.mubr.bf16.gmra.mxu0 %v1035
        %v1132 = vpop.f32.mrf.mxu0
        %v1133 = vadd.f32 0.0, %v1132
        %v1134 = vpop.f32.mrf.mxu0
        %v1135 = vpop.f32.mrf.mxu0
        %v1136 = vadd.f32 0.0, %v1135
        %v1137 = vpop.f32.mrf.mxu0
        %1138 = vmatprep.mubr.bf16.mxu0 0
        %1139 = vmatmul.mubr.bf16.gmra.mxu0 %v1036
        %v1140 = vpop.f32.mrf.mxu0
        %v1141 = vadd.f32 0.0, %v1140
        %v1142 = vpop.f32.mrf.mxu0
        %v1143 = vpop.f32.mrf.mxu0
        %v1144 = vadd.f32 0.0, %v1143
        %v1145 = vpop.f32.mrf.mxu0
        %1146 = vmatprep.mubr.bf16.mxu0 0
        %1147 = vmatmul.mubr.bf16.gmra.mxu0 %v1037
        %v1148 = vpop.f32.mrf.mxu0
        %v1149 = vadd.f32 0.0, %v1148
        %v1150 = vpop.f32.mrf.mxu0
        %v1151 = vpop.f32.mrf.mxu0
        %v1152 = vadd.f32 0.0, %v1151
        %v1153 = vpop.f32.mrf.mxu0
        %1154 = vdwg.mxu0
        %v1155 = vadd.f32 %v985, %v1125
        %v1156 = vadd.f32 %v986, %v1128
        %v1157 = vadd.f32 %v987, %v1133
        %v1158 = vadd.f32 %v988, %v1136
        %v1159 = vadd.f32 %v989, %v1141
        %v1160 = vadd.f32 %v990, %v1144
        %v1161 = vadd.f32 %v991, %v1149
        %v1162 = vadd.f32 %v992, %v1152
        %v1163 = vld [vmem:[%s206 + $0x8] sm:$0xf]
        %v1164 = vld [vmem:[%s206 + $0x18] sm:$0x1]
        %v1165 = vld [vmem:[%s206 + $0x28] sm:$0xf]
        %v1166 = vld [vmem:[%s206 + $0x38] sm:$0x1]
        %v1167 = vld [vmem:[%s206 + $0x48] sm:$0xf]
        %v1168 = vld [vmem:[%s206 + $0x58] sm:$0x1]
        %v1169 = vld [vmem:[%s206 + $0x68] sm:$0xf]
        %v1170 = vld [vmem:[%s206 + $0x78] sm:$0x1]
        %v1171 = vld [vmem:[%s206 + $0x88] sm:$0xf]
        %v1172 = vld [vmem:[%s206 + $0x98] sm:$0x1]
        %v1173 = vld [vmem:[%s206 + $0xa8] sm:$0xf]
        %v1174 = vld [vmem:[%s206 + $0xb8] sm:$0x1]
        %v1175 = vld [vmem:[%s206 + $0xc8] sm:$0xf]
        %v1176 = vld [vmem:[%s206 + $0xd8] sm:$0x1]
        %v1177 = vld [vmem:[%s206 + $0xe8] sm:$0xf]
        %v1178 = vld [vmem:[%s206 + $0xf8] sm:$0x1]
        %v1180 = vshrl.u32 %v1163, 16
        %v1182 = vrot.slane %v1180, 4
        %v1183 = vshll.u32 %v1163, 16
        %v1185 = vrot.slane %v1183, 5
        %v1186 = vor.u32 %v1182, %v1185
        %v1187 = vrot.slane %v1186, 4
        %v1189 = vshll.u32 %v1164, 16
        %v1191 = vrot.slane %v1189, 5
        %v1192 = vsel %vm556, %v1187, %v1191
        %v1194 = vshrl.u32 %v1165, 16
        %v1196 = vrot.slane %v1194, 4
        %v1197 = vshll.u32 %v1165, 16
        %v1199 = vrot.slane %v1197, 5
        %v1200 = vor.u32 %v1196, %v1199
        %v1201 = vrot.slane %v1200, 4
        %v1203 = vshll.u32 %v1166, 16
        %v1205 = vrot.slane %v1203, 5
        %v1206 = vsel %vm556, %v1201, %v1205
        %v1208 = vshrl.u32 %v1167, 16
        %v1210 = vrot.slane %v1208, 4
        %v1211 = vshll.u32 %v1167, 16
        %v1213 = vrot.slane %v1211, 5
        %v1214 = vor.u32 %v1210, %v1213
        %v1215 = vrot.slane %v1214, 4
        %v1217 = vshll.u32 %v1168, 16
        %v1219 = vrot.slane %v1217, 5
        %v1220 = vsel %vm556, %v1215, %v1219
        %v1222 = vshrl.u32 %v1169, 16
        %v1224 = vrot.slane %v1222, 4
        %v1225 = vshll.u32 %v1169, 16
        %v1227 = vrot.slane %v1225, 5
        %v1228 = vor.u32 %v1224, %v1227
        %v1229 = vrot.slane %v1228, 4
        %v1231 = vshll.u32 %v1170, 16
        %v1233 = vrot.slane %v1231, 5
        %v1234 = vsel %vm556, %v1229, %v1233
        %v1236 = vshrl.u32 %v1171, 16
        %v1238 = vrot.slane %v1236, 4
        %v1239 = vshll.u32 %v1171, 16
        %v1241 = vrot.slane %v1239, 5
        %v1242 = vor.u32 %v1238, %v1241
        %v1243 = vrot.slane %v1242, 4
        %v1245 = vshll.u32 %v1172, 16
        %v1247 = vrot.slane %v1245, 5
        %v1248 = vsel %vm556, %v1243, %v1247
        %v1250 = vshrl.u32 %v1173, 16
        %v1252 = vrot.slane %v1250, 4
        %v1253 = vshll.u32 %v1173, 16
        %v1255 = vrot.slane %v1253, 5
        %v1256 = vor.u32 %v1252, %v1255
        %v1257 = vrot.slane %v1256, 4
        %v1259 = vshll.u32 %v1174, 16
        %v1261 = vrot.slane %v1259, 5
        %v1262 = vsel %vm556, %v1257, %v1261
        %v1264 = vshrl.u32 %v1175, 16
        %v1266 = vrot.slane %v1264, 4
        %v1267 = vshll.u32 %v1175, 16
        %v1269 = vrot.slane %v1267, 5
        %v1270 = vor.u32 %v1266, %v1269
        %v1271 = vrot.slane %v1270, 4
        %v1273 = vshll.u32 %v1176, 16
        %v1275 = vrot.slane %v1273, 5
        %v1276 = vsel %vm556, %v1271, %v1275
        %v1278 = vshrl.u32 %v1177, 16
        %v1280 = vrot.slane %v1278, 4
        %v1281 = vshll.u32 %v1177, 16
        %v1283 = vrot.slane %v1281, 5
        %v1284 = vor.u32 %v1280, %v1283
        %v1285 = vrot.slane %v1284, 4
        %v1287 = vshll.u32 %v1178, 16
        %v1289 = vrot.slane %v1287, 5
        %v1290 = vsel %vm556, %v1285, %v1289
        %s1291 = scalar_lea.vmem %s210, 320
        %v1292 = vld [vmem:[%s1291] sm:$0xf]
        %v1293 = vld [vmem:[%s1291 + $0x4] sm:$0xf]
        %v1294 = vld [vmem:[%s1291 + $0x8] sm:$0xf]
        %v1295 = vld [vmem:[%s1291 + $0xc] sm:$0xf]
        %v1296 = vld [vmem:[%s1291 + $0x10] sm:$0xf]
        %v1297 = vld [vmem:[%s1291 + $0x14] sm:$0xf]
        %v1298 = vld [vmem:[%s1291 + $0x18] sm:$0xf]
        %v1299 = vld [vmem:[%s1291 + $0x1c] sm:$0xf]
        %v1300 = vld [vmem:[%s1291 + $0x20] sm:$0xf]
        %v1301 = vld [vmem:[%s1291 + $0x24] sm:$0xf]
        %v1302 = vld [vmem:[%s1291 + $0x28] sm:$0xf]
        %v1303 = vld [vmem:[%s1291 + $0x2c] sm:$0xf]
        %v1304 = vld [vmem:[%s1291 + $0x30] sm:$0xf]
        %v1305 = vld [vmem:[%s1291 + $0x34] sm:$0xf]
        %v1306 = vld [vmem:[%s1291 + $0x38] sm:$0xf]
        %v1307 = vld [vmem:[%s1291 + $0x3c] sm:$0xf]
        %v1308 = vunpack.c.l.b16 %v1192
        %v1309 = vunpack.c.l.b16 %v1206
        %v1310 = vunpack.c.l.b16 %v1220
        %v1311 = vunpack.c.l.b16 %v1234
        %v1312 = vunpack.c.l.b16 %v1248
        %v1313 = vunpack.c.l.b16 %v1262
        %v1314 = vunpack.c.l.b16 %v1276
        %v1315 = vunpack.c.l.b16 %v1290
        %v1316 = vpack.c.b16 %v1309, %v1308
        %v1317 = vpack.c.b16 %v1311, %v1310
        %v1318 = vpack.c.b16 %v1313, %v1312
        %v1319 = vpack.c.b16 %v1315, %v1314
        %v1340 = vunpack.c.l.b16 %v1292
        %v1341 = vunpack.c.l.b16 %v1293
        %v1342 = vunpack.c.l.b16 %v1294
        %v1343 = vunpack.c.l.b16 %v1295
        %v1344 = vunpack.c.l.b16 %v1296
        %v1345 = vunpack.c.l.b16 %v1297
        %v1346 = vunpack.c.l.b16 %v1298
        %v1347 = vunpack.c.l.b16 %v1299
        %v1348 = vunpack.c.l.b16 %v1300
        %v1349 = vunpack.c.l.b16 %v1301
        %v1350 = vunpack.c.l.b16 %v1302
        %v1351 = vunpack.c.l.b16 %v1303
        %v1352 = vunpack.c.l.b16 %v1304
        %v1353 = vunpack.c.l.b16 %v1305
        %v1354 = vunpack.c.l.b16 %v1306
        %v1355 = vunpack.c.l.b16 %v1307
        %v1356 = vpack.c.b16 %v1341, %v1340
        %v1357 = vpack.c.b16 %v1343, %v1342
        %v1358 = vpack.c.b16 %v1345, %v1344
        %v1359 = vpack.c.b16 %v1347, %v1346
        %v1360 = vpack.c.b16 %v1349, %v1348
        %v1361 = vpack.c.b16 %v1351, %v1350
        %v1362 = vpack.c.b16 %v1353, %v1352
        %v1363 = vpack.c.b16 %v1355, %v1354
        %1372 = vmatprep.subr.bf16.mxu0 0
        %1373 = vmatpush1.bf16.msra.mxu0 %v1363
        %1374 = vmatprep.subr.bf16.mxu0 0
        %1375 = vmatpush1.bf16.msra.mxu0 %v1362
        %1376 = vmatprep.subr.bf16.mxu0 0
        %1377 = vmatpush1.bf16.msra.mxu0 %v1361
        %1378 = vmatprep.subr.bf16.mxu0 0
        %1379 = vmatpush1.bf16.msra.mxu0 %v1360
        %1380 = vmatprep.subr.bf16.mxu0 0
        %1381 = vmatpush1.bf16.msra.mxu0 %v1359
        %1382 = vmatprep.subr.bf16.mxu0 0
        %1383 = vmatpush1.bf16.msra.mxu0 %v1358
        %1384 = vmatprep.subr.bf16.mxu0 0
        %1385 = vmatpush1.bf16.msra.mxu0 %v1357
        %1386 = vmatprep.subr.bf16.mxu0 0
        %1387 = vmatpush1.bf16.msra.mxu0 %v1356
        %1388 = vmatprep.subr.bf16.mxu0 0
        %1389 = vmatpush2.bf16.msra.mxu0 0
        %1390 = vmatprep.subr.bf16.mxu0 0
        %1391 = vmatpush2.bf16.msra.mxu0 0
        %1392 = vmatprep.subr.bf16.mxu0 0
        %1393 = vmatpush2.bf16.msra.mxu0 0
        %1394 = vmatprep.subr.bf16.mxu0 0
        %1395 = vmatpush2.bf16.msra.mxu0 0
        %1396 = vmatprep.subr.bf16.mxu0 0
        %1397 = vmatpush2.bf16.msra.mxu0 0
        %1398 = vmatprep.subr.bf16.mxu0 0
        %1399 = vmatpush2.bf16.msra.mxu0 0
        %1400 = vmatprep.subr.bf16.mxu0 0
        %1401 = vmatpush2.bf16.msra.mxu0 0
        %1402 = vmatprep.subr.bf16.mxu0 0
        %1403 = vmatpush2.bf16.msra.mxu0 0
        %1404 = vmatprep.mubr.bf16.mxu0 0
        %1405 = vmatmul.mubr.bf16.gmra.mxu0 %v1316
        %v1406 = vpop.f32.mrf.mxu0
        %v1407 = vadd.f32 0.0, %v1406
        %v1408 = vpop.f32.mrf.mxu0
        %v1409 = vpop.f32.mrf.mxu0
        %v1410 = vadd.f32 0.0, %v1409
        %v1411 = vpop.f32.mrf.mxu0
        %1412 = vmatprep.mubr.bf16.mxu0 0
        %1413 = vmatmul.mubr.bf16.gmra.mxu0 %v1317
        %v1414 = vpop.f32.mrf.mxu0
        %v1415 = vadd.f32 0.0, %v1414
        %v1416 = vpop.f32.mrf.mxu0
        %v1417 = vpop.f32.mrf.mxu0
        %v1418 = vadd.f32 0.0, %v1417
        %v1419 = vpop.f32.mrf.mxu0
        %1420 = vmatprep.mubr.bf16.mxu0 0
        %1421 = vmatmul.mubr.bf16.gmra.mxu0 %v1318
        %v1422 = vpop.f32.mrf.mxu0
        %v1423 = vadd.f32 0.0, %v1422
        %v1424 = vpop.f32.mrf.mxu0
        %v1425 = vpop.f32.mrf.mxu0
        %v1426 = vadd.f32 0.0, %v1425
        %v1427 = vpop.f32.mrf.mxu0
        %1428 = vmatprep.mubr.bf16.mxu0 0
        %1429 = vmatmul.mubr.bf16.gmra.mxu0 %v1319
        %v1430 = vpop.f32.mrf.mxu0
        %v1431 = vadd.f32 0.0, %v1430
        %v1432 = vpop.f32.mrf.mxu0
        %v1433 = vpop.f32.mrf.mxu0
        %v1434 = vadd.f32 0.0, %v1433
        %v1435 = vpop.f32.mrf.mxu0
        %1436 = vdwg.mxu0
        %v1437 = vadd.f32 %v1155, %v1407
        %v1438 = vadd.f32 %v1156, %v1410
        %v1439 = vadd.f32 %v1157, %v1415
        %v1440 = vadd.f32 %v1158, %v1418
        %v1441 = vadd.f32 %v1159, %v1423
        %v1442 = vadd.f32 %v1160, %v1426
        %v1443 = vadd.f32 %v1161, %v1431
        %v1444 = vadd.f32 %v1162, %v1434
        %s1445 = scalar_lea.vmem %s206, 32
        %v1446 = vld [vmem:[%s1445] sm:$0xf]
        %v1447 = vld [vmem:[%s1445 + $0x20] sm:$0xf]
        %v1448 = vld [vmem:[%s1445 + $0x40] sm:$0xf]
        %v1449 = vld [vmem:[%s1445 + $0x60] sm:$0xf]
        %v1450 = vld [vmem:[%s1445 + $0x80] sm:$0xf]
        %v1451 = vld [vmem:[%s1445 + $0xa0] sm:$0xf]
        %v1452 = vld [vmem:[%s1445 + $0xc0] sm:$0xf]
        %v1453 = vld [vmem:[%s1445 + $0xe0] sm:$0xf]
        %s1454 = scalar_lea.vmem %s210, 384
        %v1455 = vld [vmem:[%s1454] sm:$0xf]
        %v1456 = vld [vmem:[%s1454 + $0x4] sm:$0xf]
        %v1457 = vld [vmem:[%s1454 + $0x8] sm:$0xf]
        %v1458 = vld [vmem:[%s1454 + $0xc] sm:$0xf]
        %v1459 = vld [vmem:[%s1454 + $0x10] sm:$0xf]
        %v1460 = vld [vmem:[%s1454 + $0x14] sm:$0xf]
        %v1461 = vld [vmem:[%s1454 + $0x18] sm:$0xf]
        %v1462 = vld [vmem:[%s1454 + $0x1c] sm:$0xf]
        %v1463 = vld [vmem:[%s1454 + $0x20] sm:$0xf]
        %v1464 = vld [vmem:[%s1454 + $0x24] sm:$0xf]
        %v1465 = vld [vmem:[%s1454 + $0x28] sm:$0xf]
        %v1466 = vld [vmem:[%s1454 + $0x2c] sm:$0xf]
        %v1467 = vld [vmem:[%s1454 + $0x30] sm:$0xf]
        %v1468 = vld [vmem:[%s1454 + $0x34] sm:$0xf]
        %v1469 = vld [vmem:[%s1454 + $0x38] sm:$0xf]
        %v1470 = vld [vmem:[%s1454 + $0x3c] sm:$0xf]
        %v1479 = vunpack.c.l.b16 %v1446
        %v1480 = vunpack.c.l.b16 %v1447
        %v1481 = vunpack.c.l.b16 %v1448
        %v1482 = vunpack.c.l.b16 %v1449
        %v1483 = vunpack.c.l.b16 %v1450
        %v1484 = vunpack.c.l.b16 %v1451
        %v1485 = vunpack.c.l.b16 %v1452
        %v1486 = vunpack.c.l.b16 %v1453
        %v1487 = vpack.c.b16 %v1480, %v1479
        %v1488 = vpack.c.b16 %v1482, %v1481
        %v1489 = vpack.c.b16 %v1484, %v1483
        %v1490 = vpack.c.b16 %v1486, %v1485
        %v1511 = vunpack.c.l.b16 %v1455
        %v1512 = vunpack.c.l.b16 %v1456
        %v1513 = vunpack.c.l.b16 %v1457
        %v1514 = vunpack.c.l.b16 %v1458
        %v1515 = vunpack.c.l.b16 %v1459
        %v1516 = vunpack.c.l.b16 %v1460
        %v1517 = vunpack.c.l.b16 %v1461
        %v1518 = vunpack.c.l.b16 %v1462
        %v1519 = vunpack.c.l.b16 %v1463
        %v1520 = vunpack.c.l.b16 %v1464
        %v1521 = vunpack.c.l.b16 %v1465
        %v1522 = vunpack.c.l.b16 %v1466
        %v1523 = vunpack.c.l.b16 %v1467
        %v1524 = vunpack.c.l.b16 %v1468
        %v1525 = vunpack.c.l.b16 %v1469
        %v1526 = vunpack.c.l.b16 %v1470
        %v1527 = vpack.c.b16 %v1512, %v1511
        %v1528 = vpack.c.b16 %v1514, %v1513
        %v1529 = vpack.c.b16 %v1516, %v1515
        %v1530 = vpack.c.b16 %v1518, %v1517
        %v1531 = vpack.c.b16 %v1520, %v1519
        %v1532 = vpack.c.b16 %v1522, %v1521
        %v1533 = vpack.c.b16 %v1524, %v1523
        %v1534 = vpack.c.b16 %v1526, %v1525
        %1543 = vmatprep.subr.bf16.mxu0 0
        %1544 = vmatpush1.bf16.msra.mxu0 %v1534
        %1545 = vmatprep.subr.bf16.mxu0 0
        %1546 = vmatpush1.bf16.msra.mxu0 %v1533
        %1547 = vmatprep.subr.bf16.mxu0 0
        %1548 = vmatpush1.bf16.msra.mxu0 %v1532
        %1549 = vmatprep.subr.bf16.mxu0 0
        %1550 = vmatpush1.bf16.msra.mxu0 %v1531
        %1551 = vmatprep.subr.bf16.mxu0 0
        %1552 = vmatpush1.bf16.msra.mxu0 %v1530
        %1553 = vmatprep.subr.bf16.mxu0 0
        %1554 = vmatpush1.bf16.msra.mxu0 %v1529
        %1555 = vmatprep.subr.bf16.mxu0 0
        %1556 = vmatpush1.bf16.msra.mxu0 %v1528
        %1557 = vmatprep.subr.bf16.mxu0 0
        %1558 = vmatpush1.bf16.msra.mxu0 %v1527
        %1559 = vmatprep.subr.bf16.mxu0 0
        %1560 = vmatpush2.bf16.msra.mxu0 0
        %1561 = vmatprep.subr.bf16.mxu0 0
        %1562 = vmatpush2.bf16.msra.mxu0 0
        %1563 = vmatprep.subr.bf16.mxu0 0
        %1564 = vmatpush2.bf16.msra.mxu0 0
        %1565 = vmatprep.subr.bf16.mxu0 0
        %1566 = vmatpush2.bf16.msra.mxu0 0
        %1567 = vmatprep.subr.bf16.mxu0 0
        %1568 = vmatpush2.bf16.msra.mxu0 0
        %1569 = vmatprep.subr.bf16.mxu0 0
        %1570 = vmatpush2.bf16.msra.mxu0 0
        %1571 = vmatprep.subr.bf16.mxu0 0
        %1572 = vmatpush2.bf16.msra.mxu0 0
        %1573 = vmatprep.subr.bf16.mxu0 0
        %1574 = vmatpush2.bf16.msra.mxu0 0
        %1575 = vmatprep.mubr.bf16.mxu0 0
        %1576 = vmatmul.mubr.bf16.gmra.mxu0 %v1487
        %v1577 = vpop.f32.mrf.mxu0
        %v1578 = vadd.f32 0.0, %v1577
        %v1579 = vpop.f32.mrf.mxu0
        %v1580 = vpop.f32.mrf.mxu0
        %v1581 = vadd.f32 0.0, %v1580
        %v1582 = vpop.f32.mrf.mxu0
        %1583 = vmatprep.mubr.bf16.mxu0 0
        %1584 = vmatmul.mubr.bf16.gmra.mxu0 %v1488
        %v1585 = vpop.f32.mrf.mxu0
        %v1586 = vadd.f32 0.0, %v1585
        %v1587 = vpop.f32.mrf.mxu0
        %v1588 = vpop.f32.mrf.mxu0
        %v1589 = vadd.f32 0.0, %v1588
        %v1590 = vpop.f32.mrf.mxu0
        %1591 = vmatprep.mubr.bf16.mxu0 0
        %1592 = vmatmul.mubr.bf16.gmra.mxu0 %v1489
        %v1593 = vpop.f32.mrf.mxu0
        %v1594 = vadd.f32 0.0, %v1593
        %v1595 = vpop.f32.mrf.mxu0
        %v1596 = vpop.f32.mrf.mxu0
        %v1597 = vadd.f32 0.0, %v1596
        %v1598 = vpop.f32.mrf.mxu0
        %1599 = vmatprep.mubr.bf16.mxu0 0
        %1600 = vmatmul.mubr.bf16.gmra.mxu0 %v1490
        %v1601 = vpop.f32.mrf.mxu0
        %v1602 = vadd.f32 0.0, %v1601
        %v1603 = vpop.f32.mrf.mxu0
        %v1604 = vpop.f32.mrf.mxu0
        %v1605 = vadd.f32 0.0, %v1604
        %v1606 = vpop.f32.mrf.mxu0
        %1607 = vdwg.mxu0
        %v1608 = vadd.f32 %v1437, %v1578
        %v1609 = vadd.f32 %v1438, %v1581
        %v1610 = vadd.f32 %v1439, %v1586
        %v1611 = vadd.f32 %v1440, %v1589
        %v1612 = vadd.f32 %v1441, %v1594
        %v1613 = vadd.f32 %v1442, %v1597
        %v1614 = vadd.f32 %v1443, %v1602
        %v1615 = vadd.f32 %v1444, %v1605
        %v1616 = vld [vmem:[%s1445 + $0x4] sm:$0xf]
        %v1617 = vld [vmem:[%s1445 + $0x24] sm:$0xf]
        %v1618 = vld [vmem:[%s1445 + $0x44] sm:$0xf]
        %v1619 = vld [vmem:[%s1445 + $0x64] sm:$0xf]
        %v1620 = vld [vmem:[%s1445 + $0x84] sm:$0xf]
        %v1621 = vld [vmem:[%s1445 + $0xa4] sm:$0xf]
        %v1622 = vld [vmem:[%s1445 + $0xc4] sm:$0xf]
        %v1623 = vld [vmem:[%s1445 + $0xe4] sm:$0xf]
        %s1624 = scalar_lea.vmem %s210, 448
        %v1625 = vld [vmem:[%s1624] sm:$0xf]
        %v1626 = vld [vmem:[%s1624 + $0x4] sm:$0xf]
        %v1627 = vld [vmem:[%s1624 + $0x8] sm:$0xf]
        %v1628 = vld [vmem:[%s1624 + $0xc] sm:$0xf]
        %v1629 = vld [vmem:[%s1624 + $0x10] sm:$0xf]
        %v1630 = vld [vmem:[%s1624 + $0x14] sm:$0xf]
        %v1631 = vld [vmem:[%s1624 + $0x18] sm:$0xf]
        %v1632 = vld [vmem:[%s1624 + $0x1c] sm:$0xf]
        %v1633 = vld [vmem:[%s1624 + $0x20] sm:$0xf]
        %v1634 = vld [vmem:[%s1624 + $0x24] sm:$0xf]
        %v1635 = vld [vmem:[%s1624 + $0x28] sm:$0xf]
        %v1636 = vld [vmem:[%s1624 + $0x2c] sm:$0xf]
        %v1637 = vld [vmem:[%s1624 + $0x30] sm:$0xf]
        %v1638 = vld [vmem:[%s1624 + $0x34] sm:$0xf]
        %v1639 = vld [vmem:[%s1624 + $0x38] sm:$0xf]
        %v1640 = vld [vmem:[%s1624 + $0x3c] sm:$0xf]
        %v1649 = vunpack.c.l.b16 %v1616
        %v1650 = vunpack.c.l.b16 %v1617
        %v1651 = vunpack.c.l.b16 %v1618
        %v1652 = vunpack.c.l.b16 %v1619
        %v1653 = vunpack.c.l.b16 %v1620
        %v1654 = vunpack.c.l.b16 %v1621
        %v1655 = vunpack.c.l.b16 %v1622
        %v1656 = vunpack.c.l.b16 %v1623
        %v1657 = vpack.c.b16 %v1650, %v1649
        %v1658 = vpack.c.b16 %v1652, %v1651
        %v1659 = vpack.c.b16 %v1654, %v1653
        %v1660 = vpack.c.b16 %v1656, %v1655
        %v1681 = vunpack.c.l.b16 %v1625
        %v1682 = vunpack.c.l.b16 %v1626
        %v1683 = vunpack.c.l.b16 %v1627
        %v1684 = vunpack.c.l.b16 %v1628
        %v1685 = vunpack.c.l.b16 %v1629
        %v1686 = vunpack.c.l.b16 %v1630
        %v1687 = vunpack.c.l.b16 %v1631
        %v1688 = vunpack.c.l.b16 %v1632
        %v1689 = vunpack.c.l.b16 %v1633
        %v1690 = vunpack.c.l.b16 %v1634
        %v1691 = vunpack.c.l.b16 %v1635
        %v1692 = vunpack.c.l.b16 %v1636
        %v1693 = vunpack.c.l.b16 %v1637
        %v1694 = vunpack.c.l.b16 %v1638
        %v1695 = vunpack.c.l.b16 %v1639
        %v1696 = vunpack.c.l.b16 %v1640
        %v1697 = vpack.c.b16 %v1682, %v1681
        %v1698 = vpack.c.b16 %v1684, %v1683
        %v1699 = vpack.c.b16 %v1686, %v1685
        %v1700 = vpack.c.b16 %v1688, %v1687
        %v1701 = vpack.c.b16 %v1690, %v1689
        %v1702 = vpack.c.b16 %v1692, %v1691
        %v1703 = vpack.c.b16 %v1694, %v1693
        %v1704 = vpack.c.b16 %v1696, %v1695
        %1713 = vmatprep.subr.bf16.mxu0 0
        %1714 = vmatpush1.bf16.msra.mxu0 %v1704
        %1715 = vmatprep.subr.bf16.mxu0 0
        %1716 = vmatpush1.bf16.msra.mxu0 %v1703
        %1717 = vmatprep.subr.bf16.mxu0 0
        %1718 = vmatpush1.bf16.msra.mxu0 %v1702
        %1719 = vmatprep.subr.bf16.mxu0 0
        %1720 = vmatpush1.bf16.msra.mxu0 %v1701
        %1721 = vmatprep.subr.bf16.mxu0 0
        %1722 = vmatpush1.bf16.msra.mxu0 %v1700
        %1723 = vmatprep.subr.bf16.mxu0 0
        %1724 = vmatpush1.bf16.msra.mxu0 %v1699
        %1725 = vmatprep.subr.bf16.mxu0 0
        %1726 = vmatpush1.bf16.msra.mxu0 %v1698
        %1727 = vmatprep.subr.bf16.mxu0 0
        %1728 = vmatpush1.bf16.msra.mxu0 %v1697
        %1729 = vmatprep.subr.bf16.mxu0 0
        %1730 = vmatpush2.bf16.msra.mxu0 0
        %1731 = vmatprep.subr.bf16.mxu0 0
        %1732 = vmatpush2.bf16.msra.mxu0 0
        %1733 = vmatprep.subr.bf16.mxu0 0
        %1734 = vmatpush2.bf16.msra.mxu0 0
        %1735 = vmatprep.subr.bf16.mxu0 0
        %1736 = vmatpush2.bf16.msra.mxu0 0
        %1737 = vmatprep.subr.bf16.mxu0 0
        %1738 = vmatpush2.bf16.msra.mxu0 0
        %1739 = vmatprep.subr.bf16.mxu0 0
        %1740 = vmatpush2.bf16.msra.mxu0 0
        %1741 = vmatprep.subr.bf16.mxu0 0
        %1742 = vmatpush2.bf16.msra.mxu0 0
        %1743 = vmatprep.subr.bf16.mxu0 0
        %1744 = vmatpush2.bf16.msra.mxu0 0
        %1745 = vmatprep.mubr.bf16.mxu0 0
        %1746 = vmatmul.mubr.bf16.gmra.mxu0 %v1657
        %v1747 = vpop.f32.mrf.mxu0
        %v1748 = vadd.f32 0.0, %v1747
        %v1749 = vpop.f32.mrf.mxu0
        %v1750 = vpop.f32.mrf.mxu0
        %v1751 = vadd.f32 0.0, %v1750
        %v1752 = vpop.f32.mrf.mxu0
        %1753 = vmatprep.mubr.bf16.mxu0 0
        %1754 = vmatmul.mubr.bf16.gmra.mxu0 %v1658
        %v1755 = vpop.f32.mrf.mxu0
        %v1756 = vadd.f32 0.0, %v1755
        %v1757 = vpop.f32.mrf.mxu0
        %v1758 = vpop.f32.mrf.mxu0
        %v1759 = vadd.f32 0.0, %v1758
        %v1760 = vpop.f32.mrf.mxu0
        %1761 = vmatprep.mubr.bf16.mxu0 0
        %1762 = vmatmul.mubr.bf16.gmra.mxu0 %v1659
        %v1763 = vpop.f32.mrf.mxu0
        %v1764 = vadd.f32 0.0, %v1763
        %v1765 = vpop.f32.mrf.mxu0
        %v1766 = vpop.f32.mrf.mxu0
        %v1767 = vadd.f32 0.0, %v1766
        %v1768 = vpop.f32.mrf.mxu0
        %1769 = vmatprep.mubr.bf16.mxu0 0
        %1770 = vmatmul.mubr.bf16.gmra.mxu0 %v1660
        %v1771 = vpop.f32.mrf.mxu0
        %v1772 = vadd.f32 0.0, %v1771
        %v1773 = vpop.f32.mrf.mxu0
        %v1774 = vpop.f32.mrf.mxu0
        %v1775 = vadd.f32 0.0, %v1774
        %v1776 = vpop.f32.mrf.mxu0
        %1777 = vdwg.mxu0
        %v1778 = vadd.f32 %v1608, %v1748
        %v1779 = vadd.f32 %v1609, %v1751
        %v1780 = vadd.f32 %v1610, %v1756
        %v1781 = vadd.f32 %v1611, %v1759
        %v1782 = vadd.f32 %v1612, %v1764
        %v1783 = vadd.f32 %v1613, %v1767
        %v1784 = vadd.f32 %v1614, %v1772
        %v1785 = vadd.f32 %v1615, %v1775
        %v1786 = vld [vmem:[%s1445] sm:$0xf]
        %v1787 = vld [vmem:[%s1445 + $0x10] sm:$0x1]
        %v1788 = vld [vmem:[%s1445 + $0x20] sm:$0xf]
        %v1789 = vld [vmem:[%s1445 + $0x30] sm:$0x1]
        %v1790 = vld [vmem:[%s1445 + $0x40] sm:$0xf]
        %v1791 = vld [vmem:[%s1445 + $0x50] sm:$0x1]
        %v1792 = vld [vmem:[%s1445 + $0x60] sm:$0xf]
        %v1793 = vld [vmem:[%s1445 + $0x70] sm:$0x1]
        %v1794 = vld [vmem:[%s1445 + $0x80] sm:$0xf]
        %v1795 = vld [vmem:[%s1445 + $0x90] sm:$0x1]
        %v1796 = vld [vmem:[%s1445 + $0xa0] sm:$0xf]
        %v1797 = vld [vmem:[%s1445 + $0xb0] sm:$0x1]
        %v1798 = vld [vmem:[%s1445 + $0xc0] sm:$0xf]
        %v1799 = vld [vmem:[%s1445 + $0xd0] sm:$0x1]
        %v1800 = vld [vmem:[%s1445 + $0xe0] sm:$0xf]
        %v1801 = vld [vmem:[%s1445 + $0xf0] sm:$0x1]
        %v1803 = vshrl.u32 %v1786, 16
        %v1805 = vrot.slane %v1803, 4
        %v1806 = vshll.u32 %v1786, 16
        %v1808 = vrot.slane %v1806, 5
        %v1809 = vor.u32 %v1805, %v1808
        %v1810 = vrot.slane %v1809, 4
        %v1812 = vshll.u32 %v1787, 16
        %v1814 = vrot.slane %v1812, 5
        %v1815 = vsel %vm556, %v1810, %v1814
        %v1817 = vshrl.u32 %v1788, 16
        %v1819 = vrot.slane %v1817, 4
        %v1820 = vshll.u32 %v1788, 16
        %v1822 = vrot.slane %v1820, 5
        %v1823 = vor.u32 %v1819, %v1822
        %v1824 = vrot.slane %v1823, 4
        %v1826 = vshll.u32 %v1789, 16
        %v1828 = vrot.slane %v1826, 5
        %v1829 = vsel %vm556, %v1824, %v1828
        %v1831 = vshrl.u32 %v1790, 16
        %v1833 = vrot.slane %v1831, 4
        %v1834 = vshll.u32 %v1790, 16
        %v1836 = vrot.slane %v1834, 5
        %v1837 = vor.u32 %v1833, %v1836
        %v1838 = vrot.slane %v1837, 4
        %v1840 = vshll.u32 %v1791, 16
        %v1842 = vrot.slane %v1840, 5
        %v1843 = vsel %vm556, %v1838, %v1842
        %v1845 = vshrl.u32 %v1792, 16
        %v1847 = vrot.slane %v1845, 4
        %v1848 = vshll.u32 %v1792, 16
        %v1850 = vrot.slane %v1848, 5
        %v1851 = vor.u32 %v1847, %v1850
        %v1852 = vrot.slane %v1851, 4
        %v1854 = vshll.u32 %v1793, 16
        %v1856 = vrot.slane %v1854, 5
        %v1857 = vsel %vm556, %v1852, %v1856
        %v1859 = vshrl.u32 %v1794, 16
        %v1861 = vrot.slane %v1859, 4
        %v1862 = vshll.u32 %v1794, 16
        %v1864 = vrot.slane %v1862, 5
        %v1865 = vor.u32 %v1861, %v1864
        %v1866 = vrot.slane %v1865, 4
        %v1868 = vshll.u32 %v1795, 16
        %v1870 = vrot.slane %v1868, 5
        %v1871 = vsel %vm556, %v1866, %v1870
        %v1873 = vshrl.u32 %v1796, 16
        %v1875 = vrot.slane %v1873, 4
        %v1876 = vshll.u32 %v1796, 16
        %v1878 = vrot.slane %v1876, 5
        %v1879 = vor.u32 %v1875, %v1878
        %v1880 = vrot.slane %v1879, 4
        %v1882 = vshll.u32 %v1797, 16
        %v1884 = vrot.slane %v1882, 5
        %v1885 = vsel %vm556, %v1880, %v1884
        %v1887 = vshrl.u32 %v1798, 16
        %v1889 = vrot.slane %v1887, 4
        %v1890 = vshll.u32 %v1798, 16
        %v1892 = vrot.slane %v1890, 5
        %v1893 = vor.u32 %v1889, %v1892
        %v1894 = vrot.slane %v1893, 4
        %v1896 = vshll.u32 %v1799, 16
        %v1898 = vrot.slane %v1896, 5
        %v1899 = vsel %vm556, %v1894, %v1898
        %v1901 = vshrl.u32 %v1800, 16
        %v1903 = vrot.slane %v1901, 4
        %v1904 = vshll.u32 %v1800, 16
        %v1906 = vrot.slane %v1904, 5
        %v1907 = vor.u32 %v1903, %v1906
        %v1908 = vrot.slane %v1907, 4
        %v1910 = vshll.u32 %v1801, 16
        %v1912 = vrot.slane %v1910, 5
        %v1913 = vsel %vm556, %v1908, %v1912
        %s1914 = scalar_lea.vmem %s210, 512
        %v1915 = vld [vmem:[%s1914] sm:$0xf]
        %v1916 = vld [vmem:[%s1914 + $0x4] sm:$0xf]
        %v1917 = vld [vmem:[%s1914 + $0x8] sm:$0xf]
        %v1918 = vld [vmem:[%s1914 + $0xc] sm:$0xf]
        %v1919 = vld [vmem:[%s1914 + $0x10] sm:$0xf]
        %v1920 = vld [vmem:[%s1914 + $0x14] sm:$0xf]
        %v1921 = vld [vmem:[%s1914 + $0x18] sm:$0xf]
        %v1922 = vld [vmem:[%s1914 + $0x1c] sm:$0xf]
        %v1923 = vld [vmem:[%s1914 + $0x20] sm:$0xf]
        %v1924 = vld [vmem:[%s1914 + $0x24] sm:$0xf]
        %v1925 = vld [vmem:[%s1914 + $0x28] sm:$0xf]
        %v1926 = vld [vmem:[%s1914 + $0x2c] sm:$0xf]
        %v1927 = vld [vmem:[%s1914 + $0x30] sm:$0xf]
        %v1928 = vld [vmem:[%s1914 + $0x34] sm:$0xf]
        %v1929 = vld [vmem:[%s1914 + $0x38] sm:$0xf]
        %v1930 = vld [vmem:[%s1914 + $0x3c] sm:$0xf]
        %v1931 = vunpack.c.l.b16 %v1815
        %v1932 = vunpack.c.l.b16 %v1829
        %v1933 = vunpack.c.l.b16 %v1843
        %v1934 = vunpack.c.l.b16 %v1857
        %v1935 = vunpack.c.l.b16 %v1871
        %v1936 = vunpack.c.l.b16 %v1885
        %v1937 = vunpack.c.l.b16 %v1899
        %v1938 = vunpack.c.l.b16 %v1913
        %v1939 = vpack.c.b16 %v1932, %v1931
        %v1940 = vpack.c.b16 %v1934, %v1933
        %v1941 = vpack.c.b16 %v1936, %v1935
        %v1942 = vpack.c.b16 %v1938, %v1937
        %v1963 = vunpack.c.l.b16 %v1915
        %v1964 = vunpack.c.l.b16 %v1916
        %v1965 = vunpack.c.l.b16 %v1917
        %v1966 = vunpack.c.l.b16 %v1918
        %v1967 = vunpack.c.l.b16 %v1919
        %v1968 = vunpack.c.l.b16 %v1920
        %v1969 = vunpack.c.l.b16 %v1921
        %v1970 = vunpack.c.l.b16 %v1922
        %v1971 = vunpack.c.l.b16 %v1923
        %v1972 = vunpack.c.l.b16 %v1924
        %v1973 = vunpack.c.l.b16 %v1925
        %v1974 = vunpack.c.l.b16 %v1926
        %v1975 = vunpack.c.l.b16 %v1927
        %v1976 = vunpack.c.l.b16 %v1928
        %v1977 = vunpack.c.l.b16 %v1929
        %v1978 = vunpack.c.l.b16 %v1930
        %v1979 = vpack.c.b16 %v1964, %v1963
        %v1980 = vpack.c.b16 %v1966, %v1965
        %v1981 = vpack.c.b16 %v1968, %v1967
        %v1982 = vpack.c.b16 %v1970, %v1969
        %v1983 = vpack.c.b16 %v1972, %v1971
        %v1984 = vpack.c.b16 %v1974, %v1973
        %v1985 = vpack.c.b16 %v1976, %v1975
        %v1986 = vpack.c.b16 %v1978, %v1977
        %1995 = vmatprep.subr.bf16.mxu0 0
        %1996 = vmatpush1.bf16.msra.mxu0 %v1986
        %1997 = vmatprep.subr.bf16.mxu0 0
        %1998 = vmatpush1.bf16.msra.mxu0 %v1985
        %1999 = vmatprep.subr.bf16.mxu0 0
        %2000 = vmatpush1.bf16.msra.mxu0 %v1984
        %2001 = vmatprep.subr.bf16.mxu0 0
        %2002 = vmatpush1.bf16.msra.mxu0 %v1983
        %2003 = vmatprep.subr.bf16.mxu0 0
        %2004 = vmatpush1.bf16.msra.mxu0 %v1982
        %2005 = vmatprep.subr.bf16.mxu0 0
        %2006 = vmatpush1.bf16.msra.mxu0 %v1981
        %2007 = vmatprep.subr.bf16.mxu0 0
        %2008 = vmatpush1.bf16.msra.mxu0 %v1980
        %2009 = vmatprep.subr.bf16.mxu0 0
        %2010 = vmatpush1.bf16.msra.mxu0 %v1979
        %2011 = vmatprep.subr.bf16.mxu0 0
        %2012 = vmatpush2.bf16.msra.mxu0 0
        %2013 = vmatprep.subr.bf16.mxu0 0
        %2014 = vmatpush2.bf16.msra.mxu0 0
        %2015 = vmatprep.subr.bf16.mxu0 0
        %2016 = vmatpush2.bf16.msra.mxu0 0
        %2017 = vmatprep.subr.bf16.mxu0 0
        %2018 = vmatpush2.bf16.msra.mxu0 0
        %2019 = vmatprep.subr.bf16.mxu0 0
        %2020 = vmatpush2.bf16.msra.mxu0 0
        %2021 = vmatprep.subr.bf16.mxu0 0
        %2022 = vmatpush2.bf16.msra.mxu0 0
        %2023 = vmatprep.subr.bf16.mxu0 0
        %2024 = vmatpush2.bf16.msra.mxu0 0
        %2025 = vmatprep.subr.bf16.mxu0 0
        %2026 = vmatpush2.bf16.msra.mxu0 0
        %2027 = vmatprep.mubr.bf16.mxu0 0
        %2028 = vmatmul.mubr.bf16.gmra.mxu0 %v1939
        %v2029 = vpop.f32.mrf.mxu0
        %v2030 = vadd.f32 0.0, %v2029
        %v2031 = vpop.f32.mrf.mxu0
        %v2032 = vpop.f32.mrf.mxu0
        %v2033 = vadd.f32 0.0, %v2032
        %v2034 = vpop.f32.mrf.mxu0
        %2035 = vmatprep.mubr.bf16.mxu0 0
        %2036 = vmatmul.mubr.bf16.gmra.mxu0 %v1940
        %v2037 = vpop.f32.mrf.mxu0
        %v2038 = vadd.f32 0.0, %v2037
        %v2039 = vpop.f32.mrf.mxu0
        %v2040 = vpop.f32.mrf.mxu0
        %v2041 = vadd.f32 0.0, %v2040
        %v2042 = vpop.f32.mrf.mxu0
        %2043 = vmatprep.mubr.bf16.mxu0 0
        %2044 = vmatmul.mubr.bf16.gmra.mxu0 %v1941
        %v2045 = vpop.f32.mrf.mxu0
        %v2046 = vadd.f32 0.0, %v2045
        %v2047 = vpop.f32.mrf.mxu0
        %v2048 = vpop.f32.mrf.mxu0
        %v2049 = vadd.f32 0.0, %v2048
        %v2050 = vpop.f32.mrf.mxu0
        %2051 = vmatprep.mubr.bf16.mxu0 0
        %2052 = vmatmul.mubr.bf16.gmra.mxu0 %v1942
        %v2053 = vpop.f32.mrf.mxu0
        %v2054 = vadd.f32 0.0, %v2053
        %v2055 = vpop.f32.mrf.mxu0
        %v2056 = vpop.f32.mrf.mxu0
        %v2057 = vadd.f32 0.0, %v2056
        %v2058 = vpop.f32.mrf.mxu0
        %2059 = vdwg.mxu0
        %v2060 = vadd.f32 %v1778, %v2030
        %v2061 = vadd.f32 %v1779, %v2033
        %v2062 = vadd.f32 %v1780, %v2038
        %v2063 = vadd.f32 %v1781, %v2041
        %v2064 = vadd.f32 %v1782, %v2046
        %v2065 = vadd.f32 %v1783, %v2049
        %v2066 = vadd.f32 %v1784, %v2054
        %v2067 = vadd.f32 %v1785, %v2057
        %v2068 = vld [vmem:[%s213] sm:$0x1]
        %v2070 = vlaneseq
        %v2071 = vshrl.u32 %v2070, 7
        %v2072 = vsub.s32 0, %v2071
        %v2073 = vrot.slane %v2068, %v2072
        %v2075 = vadd.f32 %v2060, %v2073
        %v2076 = vadd.f32 %v2061, %v2073
        %v2077 = vadd.f32 %v2062, %v2073
        %v2078 = vadd.f32 %v2063, %v2073
        %v2079 = vadd.f32 %v2064, %v2073
        %v2080 = vadd.f32 %v2065, %v2073
        %v2081 = vadd.f32 %v2066, %v2073
        %v2082 = vadd.f32 %v2067, %v2073
        %v2083 = vmax.f32 %v2075, 0.0
        %v2084 = vmax.f32 %v2076, 0.0
        %v2085 = vmax.f32 %v2077, 0.0
        %v2086 = vmax.f32 %v2078, 0.0
        %v2087 = vmax.f32 %v2079, 0.0
        %v2088 = vmax.f32 %v2080, 0.0
        %v2089 = vmax.f32 %v2081, 0.0
        %v2090 = vmax.f32 %v2082, 0.0
        %v2091 = vpack.c.bf16 %v2084, %v2083
        %v2092 = vpack.c.bf16 %v2086, %v2085
        %v2093 = vpack.c.bf16 %v2088, %v2087
        %v2094 = vpack.c.bf16 %v2090, %v2089
        %v2099 = vunpack.c.l.b16 %v2091
        %v2100 = vunpack.c.h.b16 %v2091
        %v2101 = vunpack.c.l.b16 %v2092
        %v2102 = vunpack.c.h.b16 %v2092
        %v2103 = vunpack.c.l.b16 %v2093
        %v2104 = vunpack.c.h.b16 %v2093
        %v2105 = vunpack.c.l.b16 %v2094
        %v2106 = vunpack.c.h.b16 %v2094
        %v2107 = vpack.c.b16 %v2099, %v2099
        %v2108 = vpack.c.b16 %v2100, %v2100
        %v2109 = vpack.c.b16 %v2101, %v2101
        %v2110 = vpack.c.b16 %v2102, %v2102
        %v2111 = vpack.c.b16 %v2103, %v2103
        %v2112 = vpack.c.b16 %v2104, %v2104
        %v2113 = vpack.c.b16 %v2105, %v2105
        %v2114 = vpack.c.b16 %v2106, %v2106
        %2123 = vst [vmem:[%s201] sm:$0xf] %v2107
        %2124 = vst [vmem:[%s201 + $0x4] sm:$0xf] %v2108
        %2125 = vst [vmem:[%s201 + $0x8] sm:$0xf] %v2109
        %2126 = vst [vmem:[%s201 + $0xc] sm:$0xf] %v2110
        %2127 = vst [vmem:[%s201 + $0x10] sm:$0xf] %v2111
        %2128 = vst [vmem:[%s201 + $0x14] sm:$0xf] %v2112
        %2129 = vst [vmem:[%s201 + $0x18] sm:$0xf] %v2113
        %2130 = vst [vmem:[%s201 + $0x1c] sm:$0xf] %v2114
        %s2131 = sand.u32 %s117, 1
        %s2132 = scalar_lea.sflag [#allocation3], %s2131
        %s2133 = sand.u32 %s117, 1
        %s2134 = smul.addr %s2133, 32
        %s2135 = scalar_lea.vmem [#allocation2], %s2134
        // Predicated region
        $region33: #{tpu_custom_call.1} parent=31 // pred_check
          %p2136 = pneg %p127
        $region34: #{tpu_custom_call.1} parent=31 // pred_check_branch
          %2138 = sbr.rel (%p2136) target = $region36
        $region35: #{tpu_custom_call.1} parent=31 // pred_region
          %s2140 = ssub.s32 512, 512
          %2141 = vsyncadd %s2132, %s2140
          %s2142 = smul.addr %s21, 8
          %s2143 = sadd.s32 %s22, %s2142
          %s2144 = smul.addr %s2143, 64
          %s2145 = scalar_lea.hbm %s3, %s2144
          %s2146 = sshll.u32 %s2135, 4
          %s2147 = int_to_ptr.vmem [resolvable:$true] %s2146
          %2152 = dma.vmem_to_hbm [thread:$0]  %s2147, 512, %s2145, %s2132, 64, 64, 4
        $region36: #{tpu_custom_call.1} parent=31 // pred_fallthru
          _
      $region32: #{tpu_custom_call.1} parent=5 // pred_fallthru
        _
      %p2153 = scmp.le.s32.totalorder 2, %s12
      // Predicated region
      $region37: #{tpu_custom_call.1} parent=5 // pred_check
        %p2154 = pneg %p2153
      $region38: #{tpu_custom_call.1} parent=5 // pred_check_branch
        %2156 = sbr.rel (%p2154) target = $region40
      $region39: #{tpu_custom_call.1} parent=5 // pred_region
        %s2157 = ssub.s32 %s12, 2
        // Predicated region
        $region41: #{tpu_custom_call.1} parent=39 // pred_check
          %p2158 = pneg %p133
        $region42: #{tpu_custom_call.1} parent=39 // pred_check_branch
          %2160 = sbr.rel (%p2158) target = $region44
        $region43: #{tpu_custom_call.1} parent=39 // pred_region
          %s2161 = sand.u32 %s118, 1
          %s2162 = scalar_lea.sflag [#allocation3], %s2161
          %s2163 = sand.u32 %s118, 1
          %s2164 = smul.addr %s2163, 32
          %s2165 = scalar_lea.vmem [#allocation2], %s2164
          %2166 = dma.done %s2162, 512
        $region44: #{tpu_custom_call.1} parent=39 // pred_fallthru
          _
      $region40: #{tpu_custom_call.1} parent=5 // pred_fallthru
        _
    $region6: #{tpu_custom_call.1} parent=1 // loop_footer
      %s16 = sadd.s32 1, %s12
    $region7: #{tpu_custom_call.1} parent=1 // loop_footer_branch
      %11 = sbr.rel target = $region3
    $region8: #{tpu_custom_call.1} parent=1 // loop_exit
      _
    %2167 = vsyncpa [#allocation3], 1
    %s2168 = scalar_lea.sflag [#allocation3], 1
    %2169 = vsyncpa %s2168, 1

</llo_original>
